<compile_context>
chip_gen: v7x
topology: tpu7x:2x2x1
jax: 0.10.0
libtpu: 0.0.40
codegen_flags: <defaults>
</compile_context>

<pallas_src>
import functools
import math

import jax
import jax.numpy as jnp
import numpy as np
from jax import lax
from jax.experimental import pallas as pl
from jax.experimental.pallas import tpu as pltpu


# ----------------------------- Pallas kernel ------------------------------ #
def _mmha_kernel(xq_ref, xkv_ref, wq_ref, bq_ref, wkv_ref, bkv_ref, wp_ref,
                 cosq_ref, sinq_ref, cosk_ref, sink_ref, o_ref,
                 *, n_heads, head_dim, scale, src_len, tq):
    qi = pl.program_id(1)
    q_off = qi * tq                                   # global row offset of tile

    D = head_dim
    Dh = D // 2
    C = n_heads * D

    xq = xq_ref[0].astype(jnp.bfloat16)               # (tq, C)
    xkv = xkv_ref[0].astype(jnp.bfloat16)             # (T,  C)
    T = xkv.shape[0]

    # Fused projections: one wide-N matmul for Q (all heads) and one for K|V
    # (all heads).  bf16 operands, f32 accumulation, f32 bias add.
    q_all = jnp.dot(xq, wq_ref[...],
                    preferred_element_type=jnp.float32) + bq_ref[...]   # (tq, C)
    kv_all = jnp.dot(xkv, wkv_ref[...],
                     preferred_element_type=jnp.float32) + bkv_ref[...]  # (T, 2C)

    cos_q = cosq_ref[...]                             # (tq, Dh)
    sin_q = sinq_ref[...]
    cos_k = cosk_ref[...]                             # (T, Dh)
    sin_k = sink_ref[...]

    # causal(-offset) mask for this query tile; finite fill value (NaN-safe).
    row = lax.broadcasted_iota(jnp.int32, (tq, T), 0) + q_off
    col = lax.broadcasted_iota(jnp.int32, (tq, T), 1)
    mask = col <= row + src_len
    neg = jnp.float32(-1e30)

    ctx_heads = []
    for h in range(n_heads):                          # static loop over heads
        # 1/sqrt(D) folded into q (O(tq*D) instead of O(tq*T)).
        q_h = q_all[:, h * D:(h + 1) * D] * scale     # (tq, D)
        k_h = kv_all[:, h * D:(h + 1) * D]            # (T,  D)
        v_h = kv_all[:, C + h * D:C + (h + 1) * D]    # (T,  D)

        # RoPE on de-interleaved halves (even dims first, odd dims second).
        qe, qo = q_h[:, :Dh], q_h[:, Dh:]
        ke, ko = k_h[:, :Dh], k_h[:, Dh:]
        q_rot = jnp.concatenate(
            [qe * cos_q - qo * sin_q, qe * sin_q + qo * cos_q], axis=-1)
        k_rot = jnp.concatenate(
            [ke * cos_k - ko * sin_k, ke * sin_k + ko * cos_k], axis=-1)

        # single full-width score matmul (bf16 operands, f32 acc).
        s = jnp.dot(q_rot.astype(jnp.bfloat16), k_rot.astype(jnp.bfloat16).T,
                    preferred_element_type=jnp.float32)          # (tq, T)
        s = jnp.where(mask, s, neg)

        # softmax with deferred normalization (divide replaced by EUP recip).
        m = jnp.max(s, axis=-1, keepdims=True)
        p = jnp.exp(s - m)
        l = jnp.sum(p, axis=-1, keepdims=True)
        ctx = jnp.dot(p.astype(jnp.bfloat16), v_h.astype(jnp.bfloat16),
                      preferred_element_type=jnp.float32)        # (tq, D)
        ctx_heads.append(ctx * pl.reciprocal(l, approx=True))

    ctx_full = jnp.concatenate(ctx_heads, axis=-1)                # (tq, C)

    # ONE out-projection with full-C contraction; o_ref written exactly once.
    o_ref[0] = jnp.dot(ctx_full.astype(jnp.bfloat16), wp_ref[...],
                       preferred_element_type=jnp.float32)


# ------------------------------- wrapper ----------------------------------- #
def masked_mha_pallas(x, params, *, n_heads, src_len, theta=10000.0,
                      q_tile=None):
    B, T, C = x.shape
    D = C // n_heads
    Dh = D // 2
    tq = T if q_tile is None else q_tile
    assert T % tq == 0
    n_qt = T // tq

    # Fold the RoPE pair interleave into a per-head column permutation.
    perm = np.concatenate([np.arange(0, D, 2), np.arange(1, D, 2)])
    col_perm = np.concatenate([h * D + perm for h in range(n_heads)])

    # torch Linear: y = x @ W.T + b  -> work with W.T (in, out).  Weights kept
    # in bf16 (halves HBM traffic & VMEM residency); biases stay f32.
    wq_p = params["wq"].T[:, col_perm].astype(jnp.bfloat16)            # (C, C)
    wk_p = params["wk"].T[:, col_perm]
    wv_p = params["wv"].T
    wkv_p = jnp.concatenate([wk_p, wv_p], axis=1).astype(jnp.bfloat16)  # (C,2C)
    wp_p = params["wp"].T.astype(jnp.bfloat16)                          # (C, C)

    bq_p = params["bq"][col_perm].reshape(1, C).astype(jnp.float32)
    bkv_p = jnp.concatenate(
        [params["bk"][col_perm], params["bv"]]).reshape(1, 2 * C).astype(
            jnp.float32)

    # RoPE tables for the first T positions.
    freqs = 1.0 / (theta ** (np.arange(0, D, 2)[:Dh].astype(np.float32) / D))
    ang = np.outer(np.arange(T, dtype=np.float32), freqs)               # (T,Dh)
    cos = jnp.asarray(np.cos(ang), jnp.float32)
    sin = jnp.asarray(np.sin(ang), jnp.float32)

    kern = functools.partial(_mmha_kernel, n_heads=n_heads, head_dim=D,
                             scale=D ** (-0.5), src_len=src_len, tq=tq)

    # Explicit VMEM budget: double-buffered blocks + in-kernel temporaries.
    def _nbytes(shape, dtype):
        return int(np.prod(shape)) * jnp.dtype(dtype).itemsize

    block_bytes = (
        _nbytes((1, tq, C), jnp.float32) + _nbytes((1, T, C), jnp.float32) +
        _nbytes((C, C), jnp.bfloat16) + _nbytes((1, C), jnp.float32) +
        _nbytes((C, 2 * C), jnp.bfloat16) + _nbytes((1, 2 * C), jnp.float32) +
        _nbytes((C, C), jnp.bfloat16) +
        2 * _nbytes((tq, Dh), jnp.float32) + 2 * _nbytes((T, Dh), jnp.float32) +
        _nbytes((1, tq, C), jnp.float32))
    tmp_bytes = 4 * (tq * T + 3 * tq * C + 2 * T * C + 2 * tq * C)
    vmem_limit = int(min(max(2 * block_bytes + tmp_bytes, 32 << 20), 64 << 20))

    return pl.pallas_call(
        kern,
        out_shape=jax.ShapeDtypeStruct((B, T, C), jnp.float32),
        grid_spec=pltpu.PrefetchScalarGridSpec(
            num_scalar_prefetch=0,
            grid=(B, n_qt),
            in_specs=[
                pl.BlockSpec((1, tq, C), lambda b, qi: (b, qi, 0)),   # x (q rows)
                pl.BlockSpec((1, T, C), lambda b, qi: (b, 0, 0)),     # x (kv rows)
                pl.BlockSpec((C, C), lambda b, qi: (0, 0)),           # Wq (fused heads)
                pl.BlockSpec((1, C), lambda b, qi: (0, 0)),           # bq
                pl.BlockSpec((C, 2 * C), lambda b, qi: (0, 0)),       # Wk|Wv (fused)
                pl.BlockSpec((1, 2 * C), lambda b, qi: (0, 0)),       # bk|bv
                pl.BlockSpec((C, C), lambda b, qi: (0, 0)),           # Wp
                pl.BlockSpec((tq, Dh), lambda b, qi: (qi, 0)),        # cos (q rows)
                pl.BlockSpec((tq, Dh), lambda b, qi: (qi, 0)),        # sin (q rows)
                pl.BlockSpec((T, Dh), lambda b, qi: (0, 0)),          # cos (k rows)
                pl.BlockSpec((T, Dh), lambda b, qi: (0, 0)),          # sin (k rows)
            ],
            out_specs=pl.BlockSpec((1, tq, C), lambda b, qi: (b, qi, 0)),
        ),
        compiler_params=pltpu.CompilerParams(
            dimension_semantics=("parallel", "parallel"),
            vmem_limit_bytes=vmem_limit),
    )(x, x, wq_p, bq_p, wkv_p, bkv_p, wp_p, cos, sin, cos, sin)


# --------------------------- pure-JAX reference ---------------------------- #
def masked_mha_reference(x, params, *, n_heads, src_len, theta=10000.0):
    B, T, C = x.shape
    D = C // n_heads
    q = (x @ params["wq"].T + params["bq"]).reshape(B, T, n_heads, D)
    k = (x @ params["wk"].T + params["bk"]).reshape(B, T, n_heads, D)
    v = (x @ params["wv"].T + params["bv"]).reshape(B, T, n_heads, D)

    freqs = 1.0 / (theta ** (np.arange(0, D, 2)[: D // 2].astype(np.float32) / D))
    ang = np.outer(np.arange(T, dtype=np.float32), freqs)       # (T, D/2)
    cos = jnp.asarray(np.cos(ang))[None, :, None, :]
    sin = jnp.asarray(np.sin(ang))[None, :, None, :]

    def rope(a):
        ar = a.reshape(B, T, n_heads, D // 2, 2)
        ae, ao = ar[..., 0], ar[..., 1]
        return jnp.stack([ae * cos - ao * sin, ae * sin + ao * cos],
                         axis=-1).reshape(B, T, n_heads, D)

    q, k = rope(q), rope(k)
    q = q.transpose(0, 2, 1, 3)
    k = k.transpose(0, 2, 1, 3)
    v = v.transpose(0, 2, 1, 3)

    attn = (q @ k.transpose(0, 1, 3, 2)) * D ** (-0.5)
    mask = np.tril(np.ones((T, T), np.float32), k=src_len)
    attn = jnp.where(mask[None, None] == 0, -jnp.inf, attn)
    attn = jax.nn.softmax(attn, axis=-1)
    out = (attn @ v).transpose(0, 2, 1, 3).reshape(B, T, C)
    return out @ params["wp"].T


# ---------------------------------- main ----------------------------------- #
if __name__ == "__main__":
    B, T, C = 2, 16, 32
    n_heads, src_len, max_len = 4, 0, 16
    D = C // n_heads

    key = jax.random.PRNGKey(0)
    ks = jax.random.split(key, 8)
    lim = 1.0 / math.sqrt(C)
    params = {
        "wq": jax.random.uniform(ks[0], (C, C), jnp.float32, -lim, lim),
        "bq": jax.random.uniform(ks[1], (C,), jnp.float32, -lim, lim),
        "wk": jax.random.uniform(ks[2], (C, C), jnp.float32, -lim, lim),
        "bk": jax.random.uniform(ks[3], (C,), jnp.float32, -lim, lim),
        "wv": jax.random.uniform(ks[4], (C, C), jnp.float32, -lim, lim),
        "bv": jax.random.uniform(ks[5], (C,), jnp.float32, -lim, lim),
        "wp": jax.random.uniform(ks[6], (C, C), jnp.float32, -lim, lim),
    }
    x = jax.random.normal(ks[7], (B, T, C), jnp.float32)

    # q_tile=8 exercises the query-tile grid axis (2 tiles of 8 rows).
    out = masked_mha_pallas(x, params, n_heads=n_heads, src_len=src_len,
                            q_tile=8)
    out = jax.block_until_ready(out)

    ref = masked_mha_reference(x, params, n_heads=n_heads, src_len=src_len)
    ref = jax.block_until_ready(ref)

    assert out.shape == (B, T, C)
    # Looser tolerance than before: MXU operands are bf16 (f32 accumulation).
    np.testing.assert_allclose(np.asarray(out), np.asarray(ref),
                               rtol=2e-2, atol=2e-2)
    print("KERNEL_OK")
</pallas_src>

<mosaic_0001>
module attributes {stable_mosaic.version = 11 : i64} {
  func.func @_mmha_kernel(%arg0: i32, %arg1: i32, %arg2: memref<1x8x32xf32, #tpu.memory_space<vmem>>, %arg3: memref<1x16x32xf32, #tpu.memory_space<vmem>>, %arg4: memref<32x32xbf16, #tpu.memory_space<vmem>>, %arg5: memref<1x32xf32, #tpu.memory_space<vmem>>, %arg6: memref<32x64xbf16, #tpu.memory_space<vmem>>, %arg7: memref<1x64xf32, #tpu.memory_space<vmem>>, %arg8: memref<32x32xbf16, #tpu.memory_space<vmem>>, %arg9: memref<8x4xf32, #tpu.memory_space<vmem>>, %arg10: memref<8x4xf32, #tpu.memory_space<vmem>>, %arg11: memref<16x4xf32, #tpu.memory_space<vmem>>, %arg12: memref<16x4xf32, #tpu.memory_space<vmem>>, %arg13: memref<1x8x32xf32, #tpu.memory_space<vmem>>) attributes {dimension_semantics = [#tpu.dimension_semantics<parallel>, #tpu.dimension_semantics<parallel>], iteration_bounds = array<i64: 2, 2>, scalar_prefetch = 0 : i64, scratch_operands = 0 : i64, tpu.core_type = #tpu.core_type<tc>, window_params = [{transform_indices = @transform_0, window_bounds = array<i64: 1, 8, 32>}, {transform_indices = @transform_1, window_bounds = array<i64: 1, 16, 32>}, {pipeline_mode = #tpu.pipeline_mode<synchronous>, transform_indices = @transform_2, window_bounds = array<i64: 32, 32>}, {pipeline_mode = #tpu.pipeline_mode<synchronous>, transform_indices = @transform_3, window_bounds = array<i64: 1, 32>}, {pipeline_mode = #tpu.pipeline_mode<synchronous>, transform_indices = @transform_4, window_bounds = array<i64: 32, 64>}, {pipeline_mode = #tpu.pipeline_mode<synchronous>, transform_indices = @transform_5, window_bounds = array<i64: 1, 64>}, {pipeline_mode = #tpu.pipeline_mode<synchronous>, transform_indices = @transform_6, window_bounds = array<i64: 32, 32>}, {transform_indices = @transform_7, window_bounds = array<i64: 8, 4>}, {transform_indices = @transform_8, window_bounds = array<i64: 8, 4>}, {pipeline_mode = #tpu.pipeline_mode<synchronous>, transform_indices = @transform_9, window_bounds = array<i64: 16, 4>}, {pipeline_mode = #tpu.pipeline_mode<synchronous>, transform_indices = @transform_10, window_bounds = array<i64: 16, 4>}, {transform_indices = @transform_11, window_bounds = array<i64: 1, 8, 32>}]} {
    %c8_i32 = arith.constant 8 : i32
    %0 = arith.muli %arg1, %c8_i32 : i32
    %c0 = arith.constant 0 : index
    %c0_0 = arith.constant 0 : index
    %c0_1 = arith.constant 0 : index
    %1 = vector.load %arg2[%c0, %c0_0, %c0_1] : memref<1x8x32xf32, #tpu.memory_space<vmem>>, vector<1x8x32xf32>
    %2 = vector.shape_cast %1 : vector<1x8x32xf32> to vector<8x32xf32>
    %3 = arith.truncf %2 : vector<8x32xf32> to vector<8x32xbf16>
    %c0_2 = arith.constant 0 : index
    %c0_3 = arith.constant 0 : index
    %c0_4 = arith.constant 0 : index
    %4 = vector.load %arg3[%c0_2, %c0_3, %c0_4] : memref<1x16x32xf32, #tpu.memory_space<vmem>>, vector<1x16x32xf32>
    %5 = vector.shape_cast %4 : vector<1x16x32xf32> to vector<16x32xf32>
    %6 = arith.truncf %5 : vector<16x32xf32> to vector<16x32xbf16>
    %c0_5 = arith.constant 0 : index
    %c0_6 = arith.constant 0 : index
    %7 = vector.load %arg4[%c0_5, %c0_6] : memref<32x32xbf16, #tpu.memory_space<vmem>>, vector<32x32xbf16>
    %cst = arith.constant dense<0.000000e+00> : vector<8x32xf32>
    %8 = tpu.matmul %3, %7, %cst {dimension_numbers = #tpu.dot_dimension_numbers<[1], [0], [0], [1], [0, 0, 1, 1], [], []>} : vector<8x32xbf16>, vector<32x32xbf16>, vector<8x32xf32> -> vector<8x32xf32>
    %c0_7 = arith.constant 0 : index
    %c0_8 = arith.constant 0 : index
    %9 = vector.load %arg5[%c0_7, %c0_8] : memref<1x32xf32, #tpu.memory_space<vmem>>, vector<1x32xf32>
    %10 = vector.broadcast %9 : vector<1x32xf32> to vector<8x32xf32>
    %11 = arith.addf %8, %10 : vector<8x32xf32>
    %c0_9 = arith.constant 0 : index
    %c0_10 = arith.constant 0 : index
    %12 = vector.load %arg6[%c0_9, %c0_10] : memref<32x64xbf16, #tpu.memory_space<vmem>>, vector<32x64xbf16>
    %cst_11 = arith.constant dense<0.000000e+00> : vector<16x64xf32>
    %13 = tpu.matmul %6, %12, %cst_11 {dimension_numbers = #tpu.dot_dimension_numbers<[1], [0], [0], [1], [0, 0, 1, 1], [], []>} : vector<16x32xbf16>, vector<32x64xbf16>, vector<16x64xf32> -> vector<16x64xf32>
    %c0_12 = arith.constant 0 : index
    %c0_13 = arith.constant 0 : index
    %14 = vector.load %arg7[%c0_12, %c0_13] : memref<1x64xf32, #tpu.memory_space<vmem>>, vector<1x64xf32>
    %15 = vector.broadcast %14 : vector<1x64xf32> to vector<16x64xf32>
    %16 = arith.addf %13, %15 : vector<16x64xf32>
    %c0_14 = arith.constant 0 : index
    %c0_15 = arith.constant 0 : index
    %17 = vector.load %arg9[%c0_14, %c0_15] : memref<8x4xf32, #tpu.memory_space<vmem>>, vector<8x4xf32>
    %c0_16 = arith.constant 0 : index
    %c0_17 = arith.constant 0 : index
    %18 = vector.load %arg10[%c0_16, %c0_17] : memref<8x4xf32, #tpu.memory_space<vmem>>, vector<8x4xf32>
    %c0_18 = arith.constant 0 : index
    %c0_19 = arith.constant 0 : index
    %19 = vector.load %arg11[%c0_18, %c0_19] : memref<16x4xf32, #tpu.memory_space<vmem>>, vector<16x4xf32>
    %c0_20 = arith.constant 0 : index
    %c0_21 = arith.constant 0 : index
    %20 = vector.load %arg12[%c0_20, %c0_21] : memref<16x4xf32, #tpu.memory_space<vmem>>, vector<16x4xf32>
    %21 = tpu.iota {dimensions = array<i32: 0>} : vector<8x16xi32>
    %22 = vector.broadcast %0 : i32 to vector<8x16xi32>
    %23 = arith.addi %21, %22 : vector<8x16xi32>
    %24 = tpu.iota {dimensions = array<i32: 1>} : vector<8x16xi32>
    %c0_i32 = arith.constant 0 : i32
    %25 = vector.broadcast %c0_i32 : i32 to vector<8x16xi32>
    %26 = arith.addi %23, %25 : vector<8x16xi32>
    %27 = arith.cmpi sle, %24, %26 : vector<8x16xi32>
    %28 = vector.extract_strided_slice %11 {offsets = [0, 0], sizes = [8, 8], strides = [1, 1]} : vector<8x32xf32> to vector<8x8xf32>
    %cst_22 = arith.constant 0.353553385 : f32
    %29 = vector.broadcast %cst_22 : f32 to vector<8x8xf32>
    %30 = arith.mulf %28, %29 : vector<8x8xf32>
    %31 = vector.extract_strided_slice %16 {offsets = [0, 0], sizes = [16, 8], strides = [1, 1]} : vector<16x64xf32> to vector<16x8xf32>
    %32 = vector.extract_strided_slice %16 {offsets = [0, 32], sizes = [16, 8], strides = [1, 1]} : vector<16x64xf32> to vector<16x8xf32>
    %33 = vector.extract_strided_slice %30 {offsets = [0, 0], sizes = [8, 4], strides = [1, 1]} : vector<8x8xf32> to vector<8x4xf32>
    %34 = vector.extract_strided_slice %30 {offsets = [0, 4], sizes = [8, 4], strides = [1, 1]} : vector<8x8xf32> to vector<8x4xf32>
    %35 = vector.extract_strided_slice %31 {offsets = [0, 0], sizes = [16, 4], strides = [1, 1]} : vector<16x8xf32> to vector<16x4xf32>
    %36 = vector.extract_strided_slice %31 {offsets = [0, 4], sizes = [16, 4], strides = [1, 1]} : vector<16x8xf32> to vector<16x4xf32>
    %37 = arith.mulf %33, %17 : vector<8x4xf32>
    %38 = arith.mulf %34, %18 : vector<8x4xf32>
    %39 = arith.subf %37, %38 : vector<8x4xf32>
    %40 = arith.mulf %33, %18 : vector<8x4xf32>
    %41 = arith.mulf %34, %17 : vector<8x4xf32>
    %42 = arith.addf %40, %41 : vector<8x4xf32>
    %43 = tpu.concatenate %39, %42 in 1 : vector<8x4xf32>, vector<8x4xf32> -> vector<8x8xf32>
    %44 = arith.mulf %35, %19 : vector<16x4xf32>
    %45 = arith.mulf %36, %20 : vector<16x4xf32>
    %46 = arith.subf %44, %45 : vector<16x4xf32>
    %47 = arith.mulf %35, %20 : vector<16x4xf32>
    %48 = arith.mulf %36, %19 : vector<16x4xf32>
    %49 = arith.addf %47, %48 : vector<16x4xf32>
    %50 = tpu.concatenate %46, %49 in 1 : vector<16x4xf32>, vector<16x4xf32> -> vector<16x8xf32>
    %51 = arith.truncf %43 : vector<8x8xf32> to vector<8x8xbf16>
    %52 = arith.truncf %50 : vector<16x8xf32> to vector<16x8xbf16>
    %53 = tpu.transpose %52, [1, 0] : vector<16x8xbf16> -> vector<8x16xbf16>
    %cst_23 = arith.constant dense<0.000000e+00> : vector<8x16xf32>
    %54 = tpu.matmul %51, %53, %cst_23 {dimension_numbers = #tpu.dot_dimension_numbers<[1], [0], [0], [1], [0, 0, 1, 1], [], []>} : vector<8x8xbf16>, vector<8x16xbf16>, vector<8x16xf32> -> vector<8x16xf32>
    %cst_24 = arith.constant -1.000000e+30 : f32
    %55 = vector.broadcast %cst_24 : f32 to vector<8x16xf32>
    %56 = arith.select %27, %54, %55 : vector<8x16xi1>, vector<8x16xf32>
    %cst_25 = arith.constant dense<0xFF800000> : vector<8xf32>
    %57 = vector.multi_reduction <maximumf>, %56, %cst_25 [1] : vector<8x16xf32> to vector<8xf32>
    %58 = vector.shape_cast %57 : vector<8xf32> to vector<8x1xf32>
    %59 = vector.broadcast %58 : vector<8x1xf32> to vector<8x16xf32>
    %60 = arith.subf %56, %59 : vector<8x16xf32>
    %61 = math.exp %60 : vector<8x16xf32>
    %cst_26 = arith.constant dense<0.000000e+00> : vector<8xf32>
    %62 = vector.multi_reduction <add>, %61, %cst_26 [1] : vector<8x16xf32> to vector<8xf32>
    %63 = vector.shape_cast %62 : vector<8xf32> to vector<8x1xf32>
    %64 = arith.truncf %61 : vector<8x16xf32> to vector<8x16xbf16>
    %65 = arith.truncf %32 : vector<16x8xf32> to vector<16x8xbf16>
    %cst_27 = arith.constant dense<0.000000e+00> : vector<8x8xf32>
    %66 = tpu.matmul %64, %65, %cst_27 {dimension_numbers = #tpu.dot_dimension_numbers<[1], [0], [0], [1], [0, 0, 1, 1], [], []>} : vector<8x16xbf16>, vector<16x8xbf16>, vector<8x8xf32> -> vector<8x8xf32>
    %67 = tpu.reciprocal %63 {approx = true} : vector<8x1xf32> -> vector<8x1xf32>
    %68 = vector.broadcast %67 : vector<8x1xf32> to vector<8x8xf32>
    %69 = arith.mulf %66, %68 : vector<8x8xf32>
    %70 = vector.extract_strided_slice %11 {offsets = [0, 8], sizes = [8, 8], strides = [1, 1]} : vector<8x32xf32> to vector<8x8xf32>
    %cst_28 = arith.constant 0.353553385 : f32
    %71 = vector.broadcast %cst_28 : f32 to vector<8x8xf32>
    %72 = arith.mulf %70, %71 : vector<8x8xf32>
    %73 = vector.extract_strided_slice %16 {offsets = [0, 8], sizes = [16, 8], strides = [1, 1]} : vector<16x64xf32> to vector<16x8xf32>
    %74 = vector.extract_strided_slice %16 {offsets = [0, 40], sizes = [16, 8], strides = [1, 1]} : vector<16x64xf32> to vector<16x8xf32>
    %75 = vector.extract_strided_slice %72 {offsets = [0, 0], sizes = [8, 4], strides = [1, 1]} : vector<8x8xf32> to vector<8x4xf32>
    %76 = vector.extract_strided_slice %72 {offsets = [0, 4], sizes = [8, 4], strides = [1, 1]} : vector<8x8xf32> to vector<8x4xf32>
    %77 = vector.extract_strided_slice %73 {offsets = [0, 0], sizes = [16, 4], strides = [1, 1]} : vector<16x8xf32> to vector<16x4xf32>
    %78 = vector.extract_strided_slice %73 {offsets = [0, 4], sizes = [16, 4], strides = [1, 1]} : vector<16x8xf32> to vector<16x4xf32>
    %79 = arith.mulf %75, %17 : vector<8x4xf32>
    %80 = arith.mulf %76, %18 : vector<8x4xf32>
    %81 = arith.subf %79, %80 : vector<8x4xf32>
    %82 = arith.mulf %75, %18 : vector<8x4xf32>
    %83 = arith.mulf %76, %17 : vector<8x4xf32>
    %84 = arith.addf %82, %83 : vector<8x4xf32>
    %85 = tpu.concatenate %81, %84 in 1 : vector<8x4xf32>, vector<8x4xf32> -> vector<8x8xf32>
    %86 = arith.mulf %77, %19 : vector<16x4xf32>
    %87 = arith.mulf %78, %20 : vector<16x4xf32>
    %88 = arith.subf %86, %87 : vector<16x4xf32>
    %89 = arith.mulf %77, %20 : vector<16x4xf32>
    %90 = arith.mulf %78, %19 : vector<16x4xf32>
    %91 = arith.addf %89, %90 : vector<16x4xf32>
    %92 = tpu.concatenate %88, %91 in 1 : vector<16x4xf32>, vector<16x4xf32> -> vector<16x8xf32>
    %93 = arith.truncf %85 : vector<8x8xf32> to vector<8x8xbf16>
    %94 = arith.truncf %92 : vector<16x8xf32> to vector<16x8xbf16>
    %95 = tpu.transpose %94, [1, 0] : vector<16x8xbf16> -> vector<8x16xbf16>
    %cst_29 = arith.constant dense<0.000000e+00> : vector<8x16xf32>
    %96 = tpu.matmul %93, %95, %cst_29 {dimension_numbers = #tpu.dot_dimension_numbers<[1], [0], [0], [1], [0, 0, 1, 1], [], []>} : vector<8x8xbf16>, vector<8x16xbf16>, vector<8x16xf32> -> vector<8x16xf32>
    %cst_30 = arith.constant -1.000000e+30 : f32
    %97 = vector.broadcast %cst_30 : f32 to vector<8x16xf32>
    %98 = arith.select %27, %96, %97 : vector<8x16xi1>, vector<8x16xf32>
    %cst_31 = arith.constant dense<0xFF800000> : vector<8xf32>
    %99 = vector.multi_reduction <maximumf>, %98, %cst_31 [1] : vector<8x16xf32> to vector<8xf32>
    %100 = vector.shape_cast %99 : vector<8xf32> to vector<8x1xf32>
    %101 = vector.broadcast %100 : vector<8x1xf32> to vector<8x16xf32>
    %102 = arith.subf %98, %101 : vector<8x16xf32>
    %103 = math.exp %102 : vector<8x16xf32>
    %cst_32 = arith.constant dense<0.000000e+00> : vector<8xf32>
    %104 = vector.multi_reduction <add>, %103, %cst_32 [1] : vector<8x16xf32> to vector<8xf32>
    %105 = vector.shape_cast %104 : vector<8xf32> to vector<8x1xf32>
    %106 = arith.truncf %103 : vector<8x16xf32> to vector<8x16xbf16>
    %107 = arith.truncf %74 : vector<16x8xf32> to vector<16x8xbf16>
    %cst_33 = arith.constant dense<0.000000e+00> : vector<8x8xf32>
    %108 = tpu.matmul %106, %107, %cst_33 {dimension_numbers = #tpu.dot_dimension_numbers<[1], [0], [0], [1], [0, 0, 1, 1], [], []>} : vector<8x16xbf16>, vector<16x8xbf16>, vector<8x8xf32> -> vector<8x8xf32>
    %109 = tpu.reciprocal %105 {approx = true} : vector<8x1xf32> -> vector<8x1xf32>
    %110 = vector.broadcast %109 : vector<8x1xf32> to vector<8x8xf32>
    %111 = arith.mulf %108, %110 : vector<8x8xf32>
    %112 = vector.extract_strided_slice %11 {offsets = [0, 16], sizes = [8, 8], strides = [1, 1]} : vector<8x32xf32> to vector<8x8xf32>
    %cst_34 = arith.constant 0.353553385 : f32
    %113 = vector.broadcast %cst_34 : f32 to vector<8x8xf32>
    %114 = arith.mulf %112, %113 : vector<8x8xf32>
    %115 = vector.extract_strided_slice %16 {offsets = [0, 16], sizes = [16, 8], strides = [1, 1]} : vector<16x64xf32> to vector<16x8xf32>
    %116 = vector.extract_strided_slice %16 {offsets = [0, 48], sizes = [16, 8], strides = [1, 1]} : vector<16x64xf32> to vector<16x8xf32>
    %117 = vector.extract_strided_slice %114 {offsets = [0, 0], sizes = [8, 4], strides = [1, 1]} : vector<8x8xf32> to vector<8x4xf32>
    %118 = vector.extract_strided_slice %114 {offsets = [0, 4], sizes = [8, 4], strides = [1, 1]} : vector<8x8xf32> to vector<8x4xf32>
    %119 = vector.extract_strided_slice %115 {offsets = [0, 0], sizes = [16, 4], strides = [1, 1]} : vector<16x8xf32> to vector<16x4xf32>
    %120 = vector.extract_strided_slice %115 {offsets = [0, 4], sizes = [16, 4], strides = [1, 1]} : vector<16x8xf32> to vector<16x4xf32>
    %121 = arith.mulf %117, %17 : vector<8x4xf32>
    %122 = arith.mulf %118, %18 : vector<8x4xf32>
    %123 = arith.subf %121, %122 : vector<8x4xf32>
    %124 = arith.mulf %117, %18 : vector<8x4xf32>
    %125 = arith.mulf %118, %17 : vector<8x4xf32>
    %126 = arith.addf %124, %125 : vector<8x4xf32>
    %127 = tpu.concatenate %123, %126 in 1 : vector<8x4xf32>, vector<8x4xf32> -> vector<8x8xf32>
    %128 = arith.mulf %119, %19 : vector<16x4xf32>
    %129 = arith.mulf %120, %20 : vector<16x4xf32>
    %130 = arith.subf %128, %129 : vector<16x4xf32>
    %131 = arith.mulf %119, %20 : vector<16x4xf32>
    %132 = arith.mulf %120, %19 : vector<16x4xf32>
    %133 = arith.addf %131, %132 : vector<16x4xf32>
    %134 = tpu.concatenate %130, %133 in 1 : vector<16x4xf32>, vector<16x4xf32> -> vector<16x8xf32>
    %135 = arith.truncf %127 : vector<8x8xf32> to vector<8x8xbf16>
    %136 = arith.truncf %134 : vector<16x8xf32> to vector<16x8xbf16>
    %137 = tpu.transpose %136, [1, 0] : vector<16x8xbf16> -> vector<8x16xbf16>
    %cst_35 = arith.constant dense<0.000000e+00> : vector<8x16xf32>
    %138 = tpu.matmul %135, %137, %cst_35 {dimension_numbers = #tpu.dot_dimension_numbers<[1], [0], [0], [1], [0, 0, 1, 1], [], []>} : vector<8x8xbf16>, vector<8x16xbf16>, vector<8x16xf32> -> vector<8x16xf32>
    %cst_36 = arith.constant -1.000000e+30 : f32
    %139 = vector.broadcast %cst_36 : f32 to vector<8x16xf32>
    %140 = arith.select %27, %138, %139 : vector<8x16xi1>, vector<8x16xf32>
    %cst_37 = arith.constant dense<0xFF800000> : vector<8xf32>
    %141 = vector.multi_reduction <maximumf>, %140, %cst_37 [1] : vector<8x16xf32> to vector<8xf32>
    %142 = vector.shape_cast %141 : vector<8xf32> to vector<8x1xf32>
    %143 = vector.broadcast %142 : vector<8x1xf32> to vector<8x16xf32>
    %144 = arith.subf %140, %143 : vector<8x16xf32>
    %145 = math.exp %144 : vector<8x16xf32>
    %cst_38 = arith.constant dense<0.000000e+00> : vector<8xf32>
    %146 = vector.multi_reduction <add>, %145, %cst_38 [1] : vector<8x16xf32> to vector<8xf32>
    %147 = vector.shape_cast %146 : vector<8xf32> to vector<8x1xf32>
    %148 = arith.truncf %145 : vector<8x16xf32> to vector<8x16xbf16>
    %149 = arith.truncf %116 : vector<16x8xf32> to vector<16x8xbf16>
    %cst_39 = arith.constant dense<0.000000e+00> : vector<8x8xf32>
    %150 = tpu.matmul %148, %149, %cst_39 {dimension_numbers = #tpu.dot_dimension_numbers<[1], [0], [0], [1], [0, 0, 1, 1], [], []>} : vector<8x16xbf16>, vector<16x8xbf16>, vector<8x8xf32> -> vector<8x8xf32>
    %151 = tpu.reciprocal %147 {approx = true} : vector<8x1xf32> -> vector<8x1xf32>
    %152 = vector.broadcast %151 : vector<8x1xf32> to vector<8x8xf32>
    %153 = arith.mulf %150, %152 : vector<8x8xf32>
    %154 = vector.extract_strided_slice %11 {offsets = [0, 24], sizes = [8, 8], strides = [1, 1]} : vector<8x32xf32> to vector<8x8xf32>
    %cst_40 = arith.constant 0.353553385 : f32
    %155 = vector.broadcast %cst_40 : f32 to vector<8x8xf32>
    %156 = arith.mulf %154, %155 : vector<8x8xf32>
    %157 = vector.extract_strided_slice %16 {offsets = [0, 24], sizes = [16, 8], strides = [1, 1]} : vector<16x64xf32> to vector<16x8xf32>
    %158 = vector.extract_strided_slice %16 {offsets = [0, 56], sizes = [16, 8], strides = [1, 1]} : vector<16x64xf32> to vector<16x8xf32>
    %159 = vector.extract_strided_slice %156 {offsets = [0, 0], sizes = [8, 4], strides = [1, 1]} : vector<8x8xf32> to vector<8x4xf32>
    %160 = vector.extract_strided_slice %156 {offsets = [0, 4], sizes = [8, 4], strides = [1, 1]} : vector<8x8xf32> to vector<8x4xf32>
    %161 = vector.extract_strided_slice %157 {offsets = [0, 0], sizes = [16, 4], strides = [1, 1]} : vector<16x8xf32> to vector<16x4xf32>
    %162 = vector.extract_strided_slice %157 {offsets = [0, 4], sizes = [16, 4], strides = [1, 1]} : vector<16x8xf32> to vector<16x4xf32>
    %163 = arith.mulf %159, %17 : vector<8x4xf32>
    %164 = arith.mulf %160, %18 : vector<8x4xf32>
    %165 = arith.subf %163, %164 : vector<8x4xf32>
    %166 = arith.mulf %159, %18 : vector<8x4xf32>
    %167 = arith.mulf %160, %17 : vector<8x4xf32>
    %168 = arith.addf %166, %167 : vector<8x4xf32>
    %169 = tpu.concatenate %165, %168 in 1 : vector<8x4xf32>, vector<8x4xf32> -> vector<8x8xf32>
    %170 = arith.mulf %161, %19 : vector<16x4xf32>
    %171 = arith.mulf %162, %20 : vector<16x4xf32>
    %172 = arith.subf %170, %171 : vector<16x4xf32>
    %173 = arith.mulf %161, %20 : vector<16x4xf32>
    %174 = arith.mulf %162, %19 : vector<16x4xf32>
    %175 = arith.addf %173, %174 : vector<16x4xf32>
    %176 = tpu.concatenate %172, %175 in 1 : vector<16x4xf32>, vector<16x4xf32> -> vector<16x8xf32>
    %177 = arith.truncf %169 : vector<8x8xf32> to vector<8x8xbf16>
    %178 = arith.truncf %176 : vector<16x8xf32> to vector<16x8xbf16>
    %179 = tpu.transpose %178, [1, 0] : vector<16x8xbf16> -> vector<8x16xbf16>
    %cst_41 = arith.constant dense<0.000000e+00> : vector<8x16xf32>
    %180 = tpu.matmul %177, %179, %cst_41 {dimension_numbers = #tpu.dot_dimension_numbers<[1], [0], [0], [1], [0, 0, 1, 1], [], []>} : vector<8x8xbf16>, vector<8x16xbf16>, vector<8x16xf32> -> vector<8x16xf32>
    %cst_42 = arith.constant -1.000000e+30 : f32
    %181 = vector.broadcast %cst_42 : f32 to vector<8x16xf32>
    %182 = arith.select %27, %180, %181 : vector<8x16xi1>, vector<8x16xf32>
    %cst_43 = arith.constant dense<0xFF800000> : vector<8xf32>
    %183 = vector.multi_reduction <maximumf>, %182, %cst_43 [1] : vector<8x16xf32> to vector<8xf32>
    %184 = vector.shape_cast %183 : vector<8xf32> to vector<8x1xf32>
    %185 = vector.broadcast %184 : vector<8x1xf32> to vector<8x16xf32>
    %186 = arith.subf %182, %185 : vector<8x16xf32>
    %187 = math.exp %186 : vector<8x16xf32>
    %cst_44 = arith.constant dense<0.000000e+00> : vector<8xf32>
    %188 = vector.multi_reduction <add>, %187, %cst_44 [1] : vector<8x16xf32> to vector<8xf32>
    %189 = vector.shape_cast %188 : vector<8xf32> to vector<8x1xf32>
    %190 = arith.truncf %187 : vector<8x16xf32> to vector<8x16xbf16>
    %191 = arith.truncf %158 : vector<16x8xf32> to vector<16x8xbf16>
    %cst_45 = arith.constant dense<0.000000e+00> : vector<8x8xf32>
    %192 = tpu.matmul %190, %191, %cst_45 {dimension_numbers = #tpu.dot_dimension_numbers<[1], [0], [0], [1], [0, 0, 1, 1], [], []>} : vector<8x16xbf16>, vector<16x8xbf16>, vector<8x8xf32> -> vector<8x8xf32>
    %193 = tpu.reciprocal %189 {approx = true} : vector<8x1xf32> -> vector<8x1xf32>
    %194 = vector.broadcast %193 : vector<8x1xf32> to vector<8x8xf32>
    %195 = arith.mulf %192, %194 : vector<8x8xf32>
    %196 = tpu.concatenate %69, %111, %153, %195 in 1 : vector<8x8xf32>, vector<8x8xf32>, vector<8x8xf32>, vector<8x8xf32> -> vector<8x32xf32>
    %197 = arith.truncf %196 : vector<8x32xf32> to vector<8x32xbf16>
    %c0_46 = arith.constant 0 : index
    %c0_47 = arith.constant 0 : index
    %198 = vector.load %arg8[%c0_46, %c0_47] : memref<32x32xbf16, #tpu.memory_space<vmem>>, vector<32x32xbf16>
    %cst_48 = arith.constant dense<0.000000e+00> : vector<8x32xf32>
    %199 = tpu.matmul %197, %198, %cst_48 {dimension_numbers = #tpu.dot_dimension_numbers<[1], [0], [0], [1], [0, 0, 1, 1], [], []>} : vector<8x32xbf16>, vector<32x32xbf16>, vector<8x32xf32> -> vector<8x32xf32>
    %c0_49 = arith.constant 0 : index
    %c0_50 = arith.constant 0 : index
    %c0_51 = arith.constant 0 : index
    %200 = vector.load %arg13[%c0_49, %c0_50, %c0_51] : memref<1x8x32xf32, #tpu.memory_space<vmem>>, vector<1x8x32xf32>
    %201 = vector.shape_cast %200 : vector<1x8x32xf32> to vector<8x32xf32>
    %202 = vector.shape_cast %199 : vector<8x32xf32> to vector<1x8x32xf32>
    tpu.vector_store %arg13[%c0_49, %c0_50, %c0_51], %202 {strides = array<i32>} : memref<1x8x32xf32, #tpu.memory_space<vmem>>, vector<1x8x32xf32>,
    return
  }
  func.func @transform_0(%arg0: i32, %arg1: i32) -> (i32, i32, i32) {
    %c0_i32 = arith.constant 0 : i32
    %c0_i32_0 = arith.constant 0 : i32
    return %arg0, %arg1, %c0_i32 : i32, i32, i32
  }
  func.func @transform_1(%arg0: i32, %arg1: i32) -> (i32, i32, i32) {
    %c0_i32 = arith.constant 0 : i32
    %c0_i32_0 = arith.constant 0 : i32
    %c0_i32_1 = arith.constant 0 : i32
    return %arg0, %c0_i32, %c0_i32_0 : i32, i32, i32
  }
  func.func @transform_2(%arg0: i32, %arg1: i32) -> (i32, i32) {
    %c0_i32 = arith.constant 0 : i32
    %c0_i32_0 = arith.constant 0 : i32
    %c0_i32_1 = arith.constant 0 : i32
    return %c0_i32, %c0_i32_0 : i32, i32
  }
  func.func @transform_3(%arg0: i32, %arg1: i32) -> (i32, i32) {
    %c0_i32 = arith.constant 0 : i32
    %c0_i32_0 = arith.constant 0 : i32
    %c0_i32_1 = arith.constant 0 : i32
    return %c0_i32, %c0_i32_0 : i32, i32
  }
  func.func @transform_4(%arg0: i32, %arg1: i32) -> (i32, i32) {
    %c0_i32 = arith.constant 0 : i32
    %c0_i32_0 = arith.constant 0 : i32
    %c0_i32_1 = arith.constant 0 : i32
    return %c0_i32, %c0_i32_0 : i32, i32
  }
  func.func @transform_5(%arg0: i32, %arg1: i32) -> (i32, i32) {
    %c0_i32 = arith.constant 0 : i32
    %c0_i32_0 = arith.constant 0 : i32
    %c0_i32_1 = arith.constant 0 : i32
    return %c0_i32, %c0_i32_0 : i32, i32
  }
  func.func @transform_6(%arg0: i32, %arg1: i32) -> (i32, i32) {
    %c0_i32 = arith.constant 0 : i32
    %c0_i32_0 = arith.constant 0 : i32
    %c0_i32_1 = arith.constant 0 : i32
    return %c0_i32, %c0_i32_0 : i32, i32
  }
  func.func @transform_7(%arg0: i32, %arg1: i32) -> (i32, i32) {
    %c0_i32 = arith.constant 0 : i32
    %c0_i32_0 = arith.constant 0 : i32
    return %arg1, %c0_i32 : i32, i32
  }
  func.func @transform_8(%arg0: i32, %arg1: i32) -> (i32, i32) {
    %c0_i32 = arith.constant 0 : i32
    %c0_i32_0 = arith.constant 0 : i32
    return %arg1, %c0_i32 : i32, i32
  }
  func.func @transform_9(%arg0: i32, %arg1: i32) -> (i32, i32) {
    %c0_i32 = arith.constant 0 : i32
    %c0_i32_0 = arith.constant 0 : i32
    %c0_i32_1 = arith.constant 0 : i32
    return %c0_i32, %c0_i32_0 : i32, i32
  }
  func.func @transform_10(%arg0: i32, %arg1: i32) -> (i32, i32) {
    %c0_i32 = arith.constant 0 : i32
    %c0_i32_0 = arith.constant 0 : i32
    %c0_i32_1 = arith.constant 0 : i32
    return %c0_i32, %c0_i32_0 : i32, i32
  }
  func.func @transform_11(%arg0: i32, %arg1: i32) -> (i32, i32, i32) {
    %c0_i32 = arith.constant 0 : i32
    %c0_i32_0 = arith.constant 0 : i32
    return %arg0, %arg1, %c0_i32 : i32, i32, i32
  }
}

</mosaic_0001>

<llo_original>
// kernel: tpu_custom_call.1
$region0: #{tpu_custom_call.1}
  #allocation0 [shape = 'u32[]', space=smem, size = 0x4, offset = 0x4, fixed_abs, tag = 'smem constant byte address 0x4 - core index']
  #allocation1 [shape = 'u32[144,128]{1,0:T(1,128)}', space=vmem, size = 0x12000, scoped, tag = 'internal scratch']
  %s0 = inlined_call_operand.vmem [shape: f32[2,16,32], index: 0, kind: input, shape index: {}]
  %s1 = inlined_call_operand.vmem [shape: f32[2,16,32], index: 1, kind: input, shape index: {}]
  %s2 = inlined_call_operand.vmem [shape: bf16[32,32], index: 2, kind: input, shape index: {}]
  %s3 = inlined_call_operand.vmem [shape: f32[1,32], index: 3, kind: input, shape index: {}]
  %s4 = inlined_call_operand.hbm [shape: bf16[32,64], index: 4, kind: input, shape index: {}]
  %s5 = inlined_call_operand.vmem [shape: f32[1,64], index: 5, kind: input, shape index: {}]
  %s6 = inlined_call_operand.vmem [shape: bf16[32,32], index: 6, kind: input, shape index: {}]
  %s7 = inlined_call_operand.vmem [shape: f32[16,4], index: 7, kind: input, shape index: {}]
  %s8 = inlined_call_operand.vmem [shape: f32[16,4], index: 8, kind: input, shape index: {}]
  %s9 = inlined_call_operand.vmem [shape: f32[16,4], index: 9, kind: input, shape index: {}]
  %s10 = inlined_call_operand.vmem [shape: f32[16,4], index: 10, kind: input, shape index: {}]
  %s11 = inlined_call_operand.hbm [shape: f32[2,16,32], index: 11, kind: output, shape index: {}]
  %s12 = sld [smem:[#allocation0]]
  $region81: #{tpu_custom_call.1} parent=0
    _
  %s14 = ssub.s32 1, %s12
  %s15 = scalar_select 0, %s14, %s12
  $region1: #{tpu_custom_call.1} parent=0
    #allocation2 [shape = 'u8[8192]{0}', space=vmem, size = 0x2000, scoped, tag = 'input window, operand 4, single buffered']
    #allocation3 [shape = 's32[2]{0}', space=sflag, size = 0x8, scoped, tag = 'scoped memory for tpu_custom_call.1']
    #allocation4 [shape = 's32[2]{0}', space=sflag, size = 0x8, scoped, tag = 'scoped memory for tpu_custom_call.1']
    #allocation5 [shape = 'u8[8192]{0}', space=vmem, size = 0x2000, scoped, tag = 'output window, operand 0']
    %16 = vsyncpa [#allocation3], 0
    %17 = vsyncpa [#allocation4], 0
    %s18 = scalar_lea.sflag [#allocation4], 1
    %19 = vsyncpa %s18, 0
    loop: start=0, step=1, limit=6
    $region2: #{tpu_custom_call.1} parent=1 // loop_pre_header
      _
    $region3: #{tpu_custom_call.1} parent=1 // loop_header
      %s21 = sphi 0, %s25
      %p22 = scmp.ge.s32.totalorder %s21, 6
      %s28 = sphi 0, %s40
      %s29 = sphi 0, %s36
      %s30 = sphi 0, %s28
      %s31 = sphi 0, %s29
      %s32 = sphi 0, %s30
      %s33 = sphi 0, %s31
      %s45 = sphi 0, %s47
      %s48 = sphi 0, %s45
      %s49 = sphi 0, %s48
      %s65 = sphi 0, %s49
      %s71 = sphi 0, %s73
      %s74 = sphi 0, %s71
      %s75 = sphi 0, %s74
      %s91 = sphi 0, %s75
      %s95 = sphi 0, %s95
      %s97 = sphi 0, %s95
      %s98 = sphi 0, %s97
      %s112 = sphi 0, %s98
      %s116 = sphi 0, %s116
      %s118 = sphi 0, %s116
      %s119 = sphi 0, %s118
      %s133 = sphi 0, %s119
      %s137 = sphi 0, %s137
      %s139 = sphi 0, %s137
      %s140 = sphi 0, %s139
      %s154 = sphi 0, %s140
      %s158 = sphi 0, %s158
      %s160 = sphi 0, %s158
      %s161 = sphi 0, %s160
      %s175 = sphi 0, %s161
      %s179 = sphi 0, %s179
      %s181 = sphi 0, %s179
      %s182 = sphi 0, %s181
      %s196 = sphi 0, %s182
      %s202 = sphi 0, %s204
      %s205 = sphi 0, %s202
      %s206 = sphi 0, %s205
      %s222 = sphi 0, %s206
      %s228 = sphi 0, %s230
      %s231 = sphi 0, %s228
      %s232 = sphi 0, %s231
      %s248 = sphi 0, %s232
      %s252 = sphi 0, %s252
      %s254 = sphi 0, %s252
      %s255 = sphi 0, %s254
      %s269 = sphi 0, %s255
      %s273 = sphi 0, %s273
      %s275 = sphi 0, %s273
      %s276 = sphi 0, %s275
      %s290 = sphi 0, %s276
      %s298 = sphi 0, %s300
      %s301 = sphi 0, %s298
      %s302 = sphi 0, %s301
      %s318 = sphi 0, %s302
    $region4: #{tpu_custom_call.1} parent=1 // loop_header_branch
      %24 = sbr.rel (%p22) target = $region8
    $region5: #{tpu_custom_call.1} parent=1 // loop_body
      %s26 = ssub.s32 %s21, 1
      %s27 = ssub.s32 %s21, 2
      %s34 = sadd.s32 1, %s29
      %p35 = scmp.ge.s32.totalorder %s34, 2
      %s36 = scalar_select %p35, 0, %s34
      %s37 = sadd.s32 1, %s28
      %s38 = scalar_select %p35, %s37, %s28
      %p39 = scmp.ge.s32.totalorder %s38, 2
      %s40 = scalar_select %p39, 0, %s38
      %s41 = ssub.s32 %s28, %s40
      %s42 = ssub.s32 %s29, %s36
      %s43 = sor.u32 %s41, %s42
      %p44 = scmp.eq.s32.totalorder %s43, 0
      %s46 = sadd.s32 %s45, 1
      %s47 = scalar_select %p44, %s45, %s46
      %p50 = pneg %p44
      %p51 = scmp.eq.s32.totalorder %s21, 3
      %p52 = por %p50, %p51
      %p53 = scmp.ne.s32.totalorder %s45, %s48
      %p54 = scmp.eq.s32.totalorder %s21, 0
      %p55 = por %p53, %p54
      %p56 = scmp.ne.s32.totalorder %s45, %s48
      %p57 = scmp.eq.s32.totalorder %s26, 3
      %p58 = por %p56, %p57
      %p59 = scmp.ne.s32.totalorder %s48, %s49
      %p60 = scmp.eq.s32.totalorder %s26, 0
      %p61 = por %p59, %p60
      %p62 = scmp.ne.s32.totalorder %s48, %s49
      %p63 = scmp.eq.s32.totalorder %s27, 3
      %p64 = por %p62, %p63
      %p66 = scmp.ne.s32.totalorder %s49, %s65
      %p67 = scmp.eq.s32.totalorder %s27, 0
      %p68 = por %p66, %p67
      %s69 = ssub.s32 %s28, %s40
      %p70 = scmp.eq.s32.totalorder %s69, 0
      %s72 = sadd.s32 %s71, 1
      %s73 = scalar_select %p70, %s71, %s72
      %p76 = pneg %p70
      %p77 = scmp.eq.s32.totalorder %s21, 3
      %p78 = por %p76, %p77
      %p79 = scmp.ne.s32.totalorder %s71, %s74
      %p80 = scmp.eq.s32.totalorder %s21, 0
      %p81 = por %p79, %p80
      %p82 = scmp.ne.s32.totalorder %s71, %s74
      %p83 = scmp.eq.s32.totalorder %s26, 3
      %p84 = por %p82, %p83
      %p85 = scmp.ne.s32.totalorder %s74, %s75
      %p86 = scmp.eq.s32.totalorder %s26, 0
      %p87 = por %p85, %p86
      %p88 = scmp.ne.s32.totalorder %s74, %s75
      %p89 = scmp.eq.s32.totalorder %s27, 3
      %p90 = por %p88, %p89
      %p92 = scmp.ne.s32.totalorder %s75, %s91
      %p93 = scmp.eq.s32.totalorder %s27, 0
      %p94 = por %p92, %p93
      %s96 = sadd.s32 %s95, 1
      %p99 = scmp.eq.s32.totalorder %s21, 3
      %p100 = scmp.ne.s32.totalorder %s95, %s97
      %p101 = scmp.eq.s32.totalorder %s21, 0
      %p102 = por %p100, %p101
      %p103 = scmp.ne.s32.totalorder %s95, %s97
      %p104 = scmp.eq.s32.totalorder %s26, 3
      %p105 = por %p103, %p104
      %p106 = scmp.ne.s32.totalorder %s97, %s98
      %p107 = scmp.eq.s32.totalorder %s26, 0
      %p108 = por %p106, %p107
      %p109 = scmp.ne.s32.totalorder %s97, %s98
      %p110 = scmp.eq.s32.totalorder %s27, 3
      %p111 = por %p109, %p110
      %p113 = scmp.ne.s32.totalorder %s98, %s112
      %p114 = scmp.eq.s32.totalorder %s27, 0
      %p115 = por %p113, %p114
      %s117 = sadd.s32 %s116, 1
      %p120 = scmp.eq.s32.totalorder %s21, 3
      %p121 = scmp.ne.s32.totalorder %s116, %s118
      %p122 = scmp.eq.s32.totalorder %s21, 0
      %p123 = por %p121, %p122
      %p124 = scmp.ne.s32.totalorder %s116, %s118
      %p125 = scmp.eq.s32.totalorder %s26, 3
      %p126 = por %p124, %p125
      %p127 = scmp.ne.s32.totalorder %s118, %s119
      %p128 = scmp.eq.s32.totalorder %s26, 0
      %p129 = por %p127, %p128
      %p130 = scmp.ne.s32.totalorder %s118, %s119
      %p131 = scmp.eq.s32.totalorder %s27, 3
      %p132 = por %p130, %p131
      %p134 = scmp.ne.s32.totalorder %s119, %s133
      %p135 = scmp.eq.s32.totalorder %s27, 0
      %p136 = por %p134, %p135
      %s138 = sadd.s32 %s137, 1
      %p141 = scmp.eq.s32.totalorder %s21, 3
      %p142 = scmp.ne.s32.totalorder %s137, %s139
      %p143 = scmp.eq.s32.totalorder %s21, 0
      %p144 = por %p142, %p143
      %p145 = scmp.ne.s32.totalorder %s137, %s139
      %p146 = scmp.eq.s32.totalorder %s26, 3
      %p147 = por %p145, %p146
      %p148 = scmp.ne.s32.totalorder %s139, %s140
      %p149 = scmp.eq.s32.totalorder %s26, 0
      %p150 = por %p148, %p149
      %p151 = scmp.ne.s32.totalorder %s139, %s140
      %p152 = scmp.eq.s32.totalorder %s27, 3
      %p153 = por %p151, %p152
      %p155 = scmp.ne.s32.totalorder %s140, %s154
      %p156 = scmp.eq.s32.totalorder %s27, 0
      %p157 = por %p155, %p156
      %s159 = sadd.s32 %s158, 1
      %p162 = scmp.eq.s32.totalorder %s21, 3
      %p163 = scmp.ne.s32.totalorder %s158, %s160
      %p164 = scmp.eq.s32.totalorder %s21, 0
      %p165 = por %p163, %p164
      %p166 = scmp.ne.s32.totalorder %s158, %s160
      %p167 = scmp.eq.s32.totalorder %s26, 3
      %p168 = por %p166, %p167
      %p169 = scmp.ne.s32.totalorder %s160, %s161
      %p170 = scmp.eq.s32.totalorder %s26, 0
      %p171 = por %p169, %p170
      %p172 = scmp.ne.s32.totalorder %s160, %s161
      %p173 = scmp.eq.s32.totalorder %s27, 3
      %p174 = por %p172, %p173
      %p176 = scmp.ne.s32.totalorder %s161, %s175
      %p177 = scmp.eq.s32.totalorder %s27, 0
      %p178 = por %p176, %p177
      %s180 = sadd.s32 %s179, 1
      %p183 = scmp.eq.s32.totalorder %s21, 3
      %p184 = scmp.ne.s32.totalorder %s179, %s181
      %p185 = scmp.eq.s32.totalorder %s21, 0
      %p186 = por %p184, %p185
      %p187 = scmp.ne.s32.totalorder %s179, %s181
      %p188 = scmp.eq.s32.totalorder %s26, 3
      %p189 = por %p187, %p188
      %p190 = scmp.ne.s32.totalorder %s181, %s182
      %p191 = scmp.eq.s32.totalorder %s26, 0
      %p192 = por %p190, %p191
      %p193 = scmp.ne.s32.totalorder %s181, %s182
      %p194 = scmp.eq.s32.totalorder %s27, 3
      %p195 = por %p193, %p194
      %p197 = scmp.ne.s32.totalorder %s182, %s196
      %p198 = scmp.eq.s32.totalorder %s27, 0
      %p199 = por %p197, %p198
      %s200 = ssub.s32 %s29, %s36
      %p201 = scmp.eq.s32.totalorder %s200, 0
      %s203 = sadd.s32 %s202, 1
      %s204 = scalar_select %p201, %s202, %s203
      %p207 = pneg %p201
      %p208 = scmp.eq.s32.totalorder %s21, 3
      %p209 = por %p207, %p208
      %p210 = scmp.ne.s32.totalorder %s202, %s205
      %p211 = scmp.eq.s32.totalorder %s21, 0
      %p212 = por %p210, %p211
      %p213 = scmp.ne.s32.totalorder %s202, %s205
      %p214 = scmp.eq.s32.totalorder %s26, 3
      %p215 = por %p213, %p214
      %p216 = scmp.ne.s32.totalorder %s205, %s206
      %p217 = scmp.eq.s32.totalorder %s26, 0
      %p218 = por %p216, %p217
      %p219 = scmp.ne.s32.totalorder %s205, %s206
      %p220 = scmp.eq.s32.totalorder %s27, 3
      %p221 = por %p219, %p220
      %p223 = scmp.ne.s32.totalorder %s206, %s222
      %p224 = scmp.eq.s32.totalorder %s27, 0
      %p225 = por %p223, %p224
      %s226 = ssub.s32 %s29, %s36
      %p227 = scmp.eq.s32.totalorder %s226, 0
      %s229 = sadd.s32 %s228, 1
      %s230 = scalar_select %p227, %s228, %s229
      %p233 = pneg %p227
      %p234 = scmp.eq.s32.totalorder %s21, 3
      %p235 = por %p233, %p234
      %p236 = scmp.ne.s32.totalorder %s228, %s231
      %p237 = scmp.eq.s32.totalorder %s21, 0
      %p238 = por %p236, %p237
      %p239 = scmp.ne.s32.totalorder %s228, %s231
      %p240 = scmp.eq.s32.totalorder %s26, 3
      %p241 = por %p239, %p240
      %p242 = scmp.ne.s32.totalorder %s231, %s232
      %p243 = scmp.eq.s32.totalorder %s26, 0
      %p244 = por %p242, %p243
      %p245 = scmp.ne.s32.totalorder %s231, %s232
      %p246 = scmp.eq.s32.totalorder %s27, 3
      %p247 = por %p245, %p246
      %p249 = scmp.ne.s32.totalorder %s232, %s248
      %p250 = scmp.eq.s32.totalorder %s27, 0
      %p251 = por %p249, %p250
      %s253 = sadd.s32 %s252, 1
      %p256 = scmp.eq.s32.totalorder %s21, 3
      %p257 = scmp.ne.s32.totalorder %s252, %s254
      %p258 = scmp.eq.s32.totalorder %s21, 0
      %p259 = por %p257, %p258
      %p260 = scmp.ne.s32.totalorder %s252, %s254
      %p261 = scmp.eq.s32.totalorder %s26, 3
      %p262 = por %p260, %p261
      %p263 = scmp.ne.s32.totalorder %s254, %s255
      %p264 = scmp.eq.s32.totalorder %s26, 0
      %p265 = por %p263, %p264
      %p266 = scmp.ne.s32.totalorder %s254, %s255
      %p267 = scmp.eq.s32.totalorder %s27, 3
      %p268 = por %p266, %p267
      %p270 = scmp.ne.s32.totalorder %s255, %s269
      %p271 = scmp.eq.s32.totalorder %s27, 0
      %p272 = por %p270, %p271
      %s274 = sadd.s32 %s273, 1
      %p277 = scmp.eq.s32.totalorder %s21, 3
      %p278 = scmp.ne.s32.totalorder %s273, %s275
      %p279 = scmp.eq.s32.totalorder %s21, 0
      %p280 = por %p278, %p279
      %p281 = scmp.ne.s32.totalorder %s273, %s275
      %p282 = scmp.eq.s32.totalorder %s26, 3
      %p283 = por %p281, %p282
      %p284 = scmp.ne.s32.totalorder %s275, %s276
      %p285 = scmp.eq.s32.totalorder %s26, 0
      %p286 = por %p284, %p285
      %p287 = scmp.ne.s32.totalorder %s275, %s276
      %p288 = scmp.eq.s32.totalorder %s27, 3
      %p289 = por %p287, %p288
      %p291 = scmp.ne.s32.totalorder %s276, %s290
      %p292 = scmp.eq.s32.totalorder %s27, 0
      %p293 = por %p291, %p292
      %s294 = ssub.s32 %s28, %s40
      %s295 = ssub.s32 %s29, %s36
      %s296 = sor.u32 %s294, %s295
      %p297 = scmp.eq.s32.totalorder %s296, 0
      %s299 = sadd.s32 %s298, 1
      %s300 = scalar_select %p297, %s298, %s299
      %p303 = pneg %p297
      %p304 = scmp.eq.s32.totalorder %s21, 3
      %p305 = por %p303, %p304
      %p306 = scmp.ne.s32.totalorder %s298, %s301
      %p307 = scmp.eq.s32.totalorder %s21, 0
      %p308 = por %p306, %p307
      %p309 = scmp.ne.s32.totalorder %s298, %s301
      %p310 = scmp.eq.s32.totalorder %s26, 3
      %p311 = por %p309, %p310
      %p312 = scmp.ne.s32.totalorder %s301, %s302
      %p313 = scmp.eq.s32.totalorder %s26, 0
      %p314 = por %p312, %p313
      %p315 = scmp.ne.s32.totalorder %s301, %s302
      %p316 = scmp.eq.s32.totalorder %s27, 3
      %p317 = por %p315, %p316
      %p319 = scmp.ne.s32.totalorder %s302, %s318
      %p320 = scmp.eq.s32.totalorder %s27, 0
      %p321 = por %p319, %p320
      %p322 = scmp.le.s32.totalorder 1, %s21
      %p323 = scmp.lt.s32.totalorder %s21, 5
      %p324 = pnand %p322, %p323
      %p325 = pneg %p324
      // Predicated region
      $region9: #{tpu_custom_call.1} parent=5 // pred_check
        _
      $region10: #{tpu_custom_call.1} parent=5 // pred_check_branch
        %327 = sbr.rel (%p324) target = $region12
      $region11: #{tpu_custom_call.1} parent=5 // pred_region
        %s328 = ssub.s32 %s21, 1
        // Predicated region
        $region13: #{tpu_custom_call.1} parent=11 // pred_check
          %p329 = pneg %p108
        $region14: #{tpu_custom_call.1} parent=11 // pred_check_branch
          %331 = sbr.rel (%p329) target = $region16
        $region15: #{tpu_custom_call.1} parent=11 // pred_region
          _
        $region16: #{tpu_custom_call.1} parent=11 // pred_fallthru
          _
        // Predicated region
        $region17: #{tpu_custom_call.1} parent=11 // pred_check
          %p332 = pneg %p129
        $region18: #{tpu_custom_call.1} parent=11 // pred_check_branch
          %334 = sbr.rel (%p332) target = $region20
        $region19: #{tpu_custom_call.1} parent=11 // pred_region
          _
        $region20: #{tpu_custom_call.1} parent=11 // pred_fallthru
          _
        // Predicated region
        $region21: #{tpu_custom_call.1} parent=11 // pred_check
          %p335 = pneg %p150
        $region22: #{tpu_custom_call.1} parent=11 // pred_check_branch
          %337 = sbr.rel (%p335) target = $region24
        $region23: #{tpu_custom_call.1} parent=11 // pred_region
          %s339 = ssub.s32 256, 256
          %340 = vsyncadd [#allocation3], %s339
          %s341 = sshll.u32 [#allocation2], 4
          %s342 = int_to_ptr.vmem [resolvable:$true] %s341
          %347 = dma.hbm_to_vmem [thread:$0]  %s4, 256, %s342, [#allocation3], 64, 64, 4
        $region24: #{tpu_custom_call.1} parent=11 // pred_fallthru
          _
        // Predicated region
        $region25: #{tpu_custom_call.1} parent=11 // pred_check
          %p348 = pneg %p171
        $region26: #{tpu_custom_call.1} parent=11 // pred_check_branch
          %350 = sbr.rel (%p348) target = $region28
        $region27: #{tpu_custom_call.1} parent=11 // pred_region
          _
        $region28: #{tpu_custom_call.1} parent=11 // pred_fallthru
          _
        // Predicated region
        $region29: #{tpu_custom_call.1} parent=11 // pred_check
          %p351 = pneg %p192
        $region30: #{tpu_custom_call.1} parent=11 // pred_check_branch
          %353 = sbr.rel (%p351) target = $region32
        $region31: #{tpu_custom_call.1} parent=11 // pred_region
          _
        $region32: #{tpu_custom_call.1} parent=11 // pred_fallthru
          _
        // Predicated region
        $region33: #{tpu_custom_call.1} parent=11 // pred_check
          %p354 = pneg %p265
        $region34: #{tpu_custom_call.1} parent=11 // pred_check_branch
          %356 = sbr.rel (%p354) target = $region36
        $region35: #{tpu_custom_call.1} parent=11 // pred_region
          _
        $region36: #{tpu_custom_call.1} parent=11 // pred_fallthru
          _
        // Predicated region
        $region37: #{tpu_custom_call.1} parent=11 // pred_check
          %p357 = pneg %p286
        $region38: #{tpu_custom_call.1} parent=11 // pred_check_branch
          %359 = sbr.rel (%p357) target = $region40
        $region39: #{tpu_custom_call.1} parent=11 // pred_region
          _
        $region40: #{tpu_custom_call.1} parent=11 // pred_fallthru
          _
      $region12: #{tpu_custom_call.1} parent=5 // pred_fallthru
        _
      %p360 = scmp.lt.s32.totalorder %s21, 4
      // Predicated region
      $region41: #{tpu_custom_call.1} parent=5 // pred_check
        %p361 = pneg %p360
      $region42: #{tpu_custom_call.1} parent=5 // pred_check_branch
        %363 = sbr.rel (%p361) target = $region44
      $region43: #{tpu_custom_call.1} parent=5 // pred_region
        // Predicated region
        $region45: #{tpu_custom_call.1} parent=43 // pred_check
          %p364 = pneg %p55
        $region46: #{tpu_custom_call.1} parent=43 // pred_check_branch
          %366 = sbr.rel (%p364) target = $region48
        $region47: #{tpu_custom_call.1} parent=43 // pred_region
          %p367 = scmp.lt.s32.totalorder %s28, 1
          %s368 = scalar_select %p367, %s28, 1
          %p369 = scmp.lt.s32.totalorder %s29, 1
          %s370 = scalar_select %p369, %s29, 1
          %s371 = smul.addr %s368, 2
          %s372 = sadd.s32 %s370, %s371
          %s373 = smul.addr %s372, 8
          %s374 = scalar_lea.vmem %s0, %s373
        $region48: #{tpu_custom_call.1} parent=43 // pred_fallthru
          _
        // Predicated region
        $region49: #{tpu_custom_call.1} parent=43 // pred_check
          %p375 = pneg %p81
        $region50: #{tpu_custom_call.1} parent=43 // pred_check_branch
          %377 = sbr.rel (%p375) target = $region52
        $region51: #{tpu_custom_call.1} parent=43 // pred_region
          %p378 = scmp.lt.s32.totalorder %s28, 1
          %s379 = scalar_select %p378, %s28, 1
          %s380 = smul.addr %s379, 2
          %s381 = smul.addr %s380, 8
          %s382 = scalar_lea.vmem %s1, %s381
        $region52: #{tpu_custom_call.1} parent=43 // pred_fallthru
          _
        // Predicated region
        $region53: #{tpu_custom_call.1} parent=43 // pred_check
          %p383 = pneg %p212
        $region54: #{tpu_custom_call.1} parent=43 // pred_check_branch
          %385 = sbr.rel (%p383) target = $region56
        $region55: #{tpu_custom_call.1} parent=43 // pred_region
          %p386 = scmp.lt.s32.totalorder %s29, 1
          %s387 = scalar_select %p386, %s29, 1
          %s388 = smul.addr %s387, 8
          %s389 = scalar_lea.vmem %s7, %s388
        $region56: #{tpu_custom_call.1} parent=43 // pred_fallthru
          _
        // Predicated region
        $region57: #{tpu_custom_call.1} parent=43 // pred_check
          %p390 = pneg %p238
        $region58: #{tpu_custom_call.1} parent=43 // pred_check_branch
          %392 = sbr.rel (%p390) target = $region60
        $region59: #{tpu_custom_call.1} parent=43 // pred_region
          %p393 = scmp.lt.s32.totalorder %s29, 1
          %s394 = scalar_select %p393, %s29, 1
          %s395 = smul.addr %s394, 8
          %s396 = scalar_lea.vmem %s8, %s395
        $region60: #{tpu_custom_call.1} parent=43 // pred_fallthru
          _
      $region44: #{tpu_custom_call.1} parent=5 // pred_fallthru
        _
      %p397 = scmp.le.s32.totalorder 1, %s21
      %p398 = scmp.lt.s32.totalorder %s21, 5
      %p399 = pnand %p397, %p398
      %p400 = pneg %p399
      // Predicated region
      $region61: #{tpu_custom_call.1} parent=5 // pred_check
        _
      $region62: #{tpu_custom_call.1} parent=5 // pred_check_branch
        %402 = sbr.rel (%p399) target = $region64
      $region63: #{tpu_custom_call.1} parent=5 // pred_region
        %s403 = ssub.s32 %s21, 1
        // Predicated region
        $region65: #{tpu_custom_call.1} parent=63 // pred_check
          %p404 = pneg %p150
        $region66: #{tpu_custom_call.1} parent=63 // pred_check_branch
          %406 = sbr.rel (%p404) target = $region68
        $region67: #{tpu_custom_call.1} parent=63 // pred_region
          %407 = dma.done [#allocation3], 256
        $region68: #{tpu_custom_call.1} parent=63 // pred_fallthru
          _
        %p408 = scmp.lt.s32.totalorder %s30, 1
        %s409 = scalar_select %p408, %s30, 1
        %p410 = scmp.lt.s32.totalorder %s31, 1
        %s411 = scalar_select %p410, %s31, 1
        %s412 = smul.addr %s409, 2
        %s413 = sadd.s32 %s411, %s412
        %s414 = smul.addr %s413, 8
        %s415 = scalar_lea.vmem %s0, %s414
        %p416 = pneg %p61
        %p417 = pneg %p58
        %p418 = scmp.lt.s32.totalorder %s30, 1
        %s419 = scalar_select %p418, %s30, 1
        %s420 = smul.addr %s419, 2
        %s421 = smul.addr %s420, 8
        %s422 = scalar_lea.vmem %s1, %s421
        %p423 = pneg %p87
        %p424 = pneg %p84
        %p425 = pneg %p108
        %p426 = pneg %p105
        %p427 = pneg %p129
        %p428 = pneg %p126
        %p429 = pneg %p150
        %p430 = pneg %p147
        %p431 = pneg %p171
        %p432 = pneg %p168
        %p433 = pneg %p192
        %p434 = pneg %p189
        %p435 = scmp.lt.s32.totalorder %s31, 1
        %s436 = scalar_select %p435, %s31, 1
        %s437 = smul.addr %s436, 8
        %s438 = scalar_lea.vmem %s7, %s437
        %p439 = pneg %p218
        %p440 = pneg %p215
        %p441 = scmp.lt.s32.totalorder %s31, 1
        %s442 = scalar_select %p441, %s31, 1
        %s443 = smul.addr %s442, 8
        %s444 = scalar_lea.vmem %s8, %s443
        %p445 = pneg %p244
        %p446 = pneg %p241
        %p447 = pneg %p265
        %p448 = pneg %p262
        %p449 = pneg %p286
        %p450 = pneg %p283
        %p451 = pneg %p314
        %p452 = pneg %p311
        %s453 = sand.u32 %s301, 1
        %s454 = scalar_lea.sflag [#allocation4], %s453
        %s455 = sand.u32 %s301, 1
        %s456 = smul.addr %s455, 8
        %s457 = scalar_lea.vmem [#allocation5], %s456
        %p458 = scmp.lt.s32.totalorder %s30, 1
        %s459 = scalar_select %p458, %s30, 1
        %p460 = scmp.lt.s32.totalorder %s31, 1
        %s461 = scalar_select %p460, %s31, 1
        %s462 = smul.addr %s459, 2
        %s463 = sadd.s32 %s461, %s462
        %s464 = smul.addr %s463, 8
        %s465 = scalar_lea.vmem %s0, %s464
        %p466 = scmp.lt.s32.totalorder %s30, 1
        %s467 = scalar_select %p466, %s30, 1
        %s468 = smul.addr %s467, 2
        %s469 = smul.addr %s468, 8
        %s470 = scalar_lea.vmem %s1, %s469
        %p471 = scmp.lt.s32.totalorder %s31, 1
        %s472 = scalar_select %p471, %s31, 1
        %s473 = smul.addr %s472, 8
        %s474 = scalar_lea.vmem %s7, %s473
        %p475 = scmp.lt.s32.totalorder %s31, 1
        %s476 = scalar_select %p475, %s31, 1
        %s477 = smul.addr %s476, 8
        %s478 = scalar_lea.vmem %s8, %s477
        %s480 = smul.u32 %s31, 8
        %v481 = vld [vmem:[%s465] sm:$0xff]
        %v482 = vpack.c.bf16 %v481, %v481
        %v483 = vld [vmem:[%s470] sm:$0xff]
        %v484 = vld [vmem:[%s470 + $0x8] sm:$0xff]
        %v485 = vpack.c.bf16 %v484, %v483
        %v486 = vld [vmem:[%s2] sm:$0xf]
        %v487 = vld [vmem:[%s2 + $0x4] sm:$0xf]
        %v488 = vld [vmem:[%s2 + $0x8] sm:$0xf]
        %v489 = vld [vmem:[%s2 + $0xc] sm:$0xf]
        %v490 = vld [vmem:[%s3] sm:$0x1]
        %v492 = vlaneseq
        %v493 = vshrl.u32 %v492, 7
        %v494 = vsub.s32 0, %v493
        %v495 = vrot.slane %v490, %v494
        %v501 = vunpack.c.l.b16 %v486
        %v502 = vunpack.c.l.b16 %v487
        %v503 = vunpack.c.l.b16 %v488
        %v504 = vunpack.c.l.b16 %v489
        %v505 = vpack.c.b16 %v502, %v501
        %v506 = vpack.c.b16 %v504, %v503
        %vm509 = vcmask 261120
        %v511 = vsel %vm509, %v482, 0
        %513 = vmatprep.subr.bf16.mxu0 0
        %514 = vmatpush1.bf16.msra.mxu0 %v505
        %515 = vmatprep.subr.bf16.mxu0 0
        %516 = vmatpush1.bf16.msra.mxu0 %v506
        %517 = vmatprep.subr.bf16.mxu0 0
        %518 = vmatpush1.bf16.msra.mxu0 0
        %519 = vmatprep.subr.bf16.mxu0 0
        %520 = vmatpush1.bf16.msra.mxu0 0
        %521 = vmatprep.subr.bf16.mxu0 0
        %522 = vmatpush1.bf16.msra.mxu0 0
        %523 = vmatprep.subr.bf16.mxu0 0
        %524 = vmatpush1.bf16.msra.mxu0 0
        %525 = vmatprep.subr.bf16.mxu0 0
        %526 = vmatpush1.bf16.msra.mxu0 0
        %527 = vmatprep.subr.bf16.mxu0 0
        %528 = vmatpush1.bf16.msra.mxu0 0
        %529 = vmatprep.subr.bf16.mxu0 0
        %530 = vmatpush1.bf16.msra.mxu0 0
        %531 = vmatprep.subr.bf16.mxu0 0
        %532 = vmatpush1.bf16.msra.mxu0 0
        %533 = vmatprep.subr.bf16.mxu0 0
        %534 = vmatpush1.bf16.msra.mxu0 0
        %535 = vmatprep.subr.bf16.mxu0 0
        %536 = vmatpush1.bf16.msra.mxu0 0
        %537 = vmatprep.subr.bf16.mxu0 0
        %538 = vmatpush1.bf16.msra.mxu0 0
        %539 = vmatprep.subr.bf16.mxu0 0
        %540 = vmatpush1.bf16.msra.mxu0 0
        %541 = vmatprep.subr.bf16.mxu0 0
        %542 = vmatpush1.bf16.msra.mxu0 0
        %543 = vmatprep.subr.bf16.mxu0 0
        %544 = vmatpush1.bf16.msra.mxu0 0
        %545 = vmatprep.mubr.bf16.mxu0 0
        %546 = vmatmul.mubr.bf16.gmra.mrb[0].mxu0 %v511
        %v547 = vpop.f32.mrb[0].mxu0
        %v548 = vadd.f32 %v495, %v547
        %v549 = vpop.f32.mrb[0].mxu0
        %v550 = vpop.f32.mrb[0].mxu0
        %v551 = vpop.f32.mrb[0].mxu0
        %552 = vdwg.mxu0
        %v553 = vld [vmem:[#allocation2] sm:$0xf]
        %v554 = vld [vmem:[#allocation2 + $0x4] sm:$0xf]
        %v555 = vld [vmem:[#allocation2 + $0x8] sm:$0xf]
        %v556 = vld [vmem:[#allocation2 + $0xc] sm:$0xf]
        %v557 = vld [vmem:[%s5] sm:$0x1]
        %v559 = vlaneseq
        %v560 = vshrl.u32 %v559, 7
        %v561 = vsub.s32 0, %v560
        %v562 = vrot.slane %v557, %v561
        %v568 = vunpack.c.l.b16 %v553
        %v569 = vunpack.c.l.b16 %v554
        %v570 = vunpack.c.l.b16 %v555
        %v571 = vunpack.c.l.b16 %v556
        %v572 = vpack.c.b16 %v569, %v568
        %v573 = vpack.c.b16 %v571, %v570
        %v577 = vsel %vm509, %v485, 0
        %579 = vmatprep.subr.bf16.mxu0 0
        %580 = vmatpush1.bf16.msra.mxu0 %v572
        %581 = vmatprep.subr.bf16.mxu0 0
        %582 = vmatpush1.bf16.msra.mxu0 %v573
        %583 = vmatprep.subr.bf16.mxu0 0
        %584 = vmatpush1.bf16.msra.mxu0 0
        %585 = vmatprep.subr.bf16.mxu0 0
        %586 = vmatpush1.bf16.msra.mxu0 0
        %587 = vmatprep.subr.bf16.mxu0 0
        %588 = vmatpush1.bf16.msra.mxu0 0
        %589 = vmatprep.subr.bf16.mxu0 0
        %590 = vmatpush1.bf16.msra.mxu0 0
        %591 = vmatprep.subr.bf16.mxu0 0
        %592 = vmatpush1.bf16.msra.mxu0 0
        %593 = vmatprep.subr.bf16.mxu0 0
        %594 = vmatpush1.bf16.msra.mxu0 0
        %595 = vmatprep.subr.bf16.mxu0 0
        %596 = vmatpush1.bf16.msra.mxu0 0
        %597 = vmatprep.subr.bf16.mxu0 0
        %598 = vmatpush1.bf16.msra.mxu0 0
        %599 = vmatprep.subr.bf16.mxu0 0
        %600 = vmatpush1.bf16.msra.mxu0 0
        %601 = vmatprep.subr.bf16.mxu0 0
        %602 = vmatpush1.bf16.msra.mxu0 0
        %603 = vmatprep.subr.bf16.mxu0 0
        %604 = vmatpush1.bf16.msra.mxu0 0
        %605 = vmatprep.subr.bf16.mxu0 0
        %606 = vmatpush1.bf16.msra.mxu0 0
        %607 = vmatprep.subr.bf16.mxu0 0
        %608 = vmatpush1.bf16.msra.mxu0 0
        %609 = vmatprep.subr.bf16.mxu0 0
        %610 = vmatpush1.bf16.msra.mxu0 0
        %611 = vmatprep.mubr.bf16.mxu0 0
        %612 = vmatmul.mubr.bf16.gmra.mrb[0].mxu0 %v577
        %v613 = vpop.f32.mrb[0].mxu0
        %v614 = vadd.f32 %v562, %v613
        %v615 = vpop.f32.mrb[0].mxu0
        %v616 = vpop.f32.mrb[0].mxu0
        %v617 = vadd.f32 %v562, %v616
        %v618 = vpop.f32.mrb[0].mxu0
        %619 = vdwg.mxu0
        %v620 = vld [vmem:[%s474] sm:$0xff]
        %v621 = vld [vmem:[%s478] sm:$0xff]
        %v622 = vld [vmem:[%s9] sm:$0xff]
        %v623 = vld [vmem:[%s9 + $0x8] sm:$0xff]
        %v624 = vld [vmem:[%s10] sm:$0xff]
        %v625 = vld [vmem:[%s10 + $0x8] sm:$0xff]
        %v626 = vlaneseq
        %v627 = vshrl.u32 %v626, 7
        %v628 = vstv %s480
        %v629 = vadd.s32 %v627, %v628
        %v630 = vlaneseq
        %v631 = vand.u32 %v630, 127
        %vm632 = vcmp.le.s32.totalorder %v631, %v629
        %v633 = vmul.f32 %v548, 0.35355338
        %v634 = vmul.f32 %v633, %v620
        %636 = vrot.lane.b32.xlu0 %v621, 4
        %v637 = vpop.permute.xlu0 %636
        %v639 = vmul.f32 %v633, %v637
        %641 = vrot.lane.b32.xlu0 %v639, 124
        %v642 = vpop.permute.xlu0 %641
        %v644 = vsub.f32 %v634, %v642
        %v645 = vmul.f32 %v633, %v621
        %647 = vrot.lane.b32.xlu0 %v620, 4
        %v648 = vpop.permute.xlu0 %647
        %v650 = vmul.f32 %v633, %v648
        %652 = vrot.lane.b32.xlu0 %v650, 124
        %v653 = vpop.permute.xlu0 %652
        %v655 = vadd.f32 %v645, %v653
        %657 = vrot.lane.b32.xlu0 %v655, 4
        %v658 = vpop.permute.xlu0 %657
        %vm660 = vcmask 31744
        %v661 = vsel %vm660, %v644, %v658
        %v662 = vmul.f32 %v614, %v622
        %v663 = vmul.f32 %v617, %v623
        %666 = vrot.lane.b32.xlu0 %v624, 4
        %v667 = vpop.permute.xlu0 %666
        %668 = vrot.lane.b32.xlu0 %v625, 4
        %v669 = vpop.permute.xlu0 %668
        %v672 = vmul.f32 %v614, %v667
        %v673 = vmul.f32 %v617, %v669
        %676 = vrot.lane.b32.xlu0 %v672, 124
        %v677 = vpop.permute.xlu0 %676
        %678 = vrot.lane.b32.xlu0 %v673, 124
        %v679 = vpop.permute.xlu0 %678
        %v682 = vsub.f32 %v662, %v677
        %v683 = vsub.f32 %v663, %v679
        %v684 = vmul.f32 %v614, %v624
        %v685 = vmul.f32 %v617, %v625
        %688 = vrot.lane.b32.xlu0 %v622, 4
        %v689 = vpop.permute.xlu0 %688
        %690 = vrot.lane.b32.xlu0 %v623, 4
        %v691 = vpop.permute.xlu0 %690
        %v694 = vmul.f32 %v614, %v689
        %v695 = vmul.f32 %v617, %v691
        %698 = vrot.lane.b32.xlu0 %v694, 124
        %v699 = vpop.permute.xlu0 %698
        %700 = vrot.lane.b32.xlu0 %v695, 124
        %v701 = vpop.permute.xlu0 %700
        %v704 = vadd.f32 %v684, %v699
        %v705 = vadd.f32 %v685, %v701
        %708 = vrot.lane.b32.xlu0 %v704, 4
        %v709 = vpop.permute.xlu0 %708
        %710 = vrot.lane.b32.xlu0 %v705, 4
        %v711 = vpop.permute.xlu0 %710
        %v714 = vsel %vm660, %v682, %v709
        %v715 = vsel %vm660, %v683, %v711
        %v716 = vpack.c.bf16 %v661, %v661
        %v717 = vpack.c.bf16 %v715, %v714
        %vm718 = vcmask 64512
        %v720 = vsel %vm718, %v716, 0
        %v723 = vsel %vm718, %v717, 0
        %725 = vmatprep.subr.bf16.mxu0 0
        %726 = vmatpush1.bf16.xpose.msra.mxu0 %v723
        %727 = vmatprep.subr.bf16.mxu0 0
        %728 = vmatpush1.bf16.xpose.msra.mxu0 0
        %729 = vmatprep.subr.bf16.mxu0 0
        %730 = vmatpush1.bf16.xpose.msra.mxu0 0
        %731 = vmatprep.subr.bf16.mxu0 0
        %732 = vmatpush1.bf16.xpose.msra.mxu0 0
        %733 = vmatprep.subr.bf16.mxu0 0
        %734 = vmatpush1.bf16.xpose.msra.mxu0 0
        %735 = vmatprep.subr.bf16.mxu0 0
        %736 = vmatpush1.bf16.xpose.msra.mxu0 0
        %737 = vmatprep.subr.bf16.mxu0 0
        %738 = vmatpush1.bf16.xpose.msra.mxu0 0
        %739 = vmatprep.subr.bf16.mxu0 0
        %740 = vmatpush1.bf16.xpose.msra.mxu0 0
        %741 = vmatprep.subr.bf16.mxu0 0
        %742 = vmatpush1.bf16.xpose.msra.mxu0 0
        %743 = vmatprep.subr.bf16.mxu0 0
        %744 = vmatpush1.bf16.xpose.msra.mxu0 0
        %745 = vmatprep.subr.bf16.mxu0 0
        %746 = vmatpush1.bf16.xpose.msra.mxu0 0
        %747 = vmatprep.subr.bf16.mxu0 0
        %748 = vmatpush1.bf16.xpose.msra.mxu0 0
        %749 = vmatprep.subr.bf16.mxu0 0
        %750 = vmatpush1.bf16.xpose.msra.mxu0 0
        %751 = vmatprep.subr.bf16.mxu0 0
        %752 = vmatpush1.bf16.xpose.msra.mxu0 0
        %753 = vmatprep.subr.bf16.mxu0 0
        %754 = vmatpush1.bf16.xpose.msra.mxu0 0
        %755 = vmatprep.subr.bf16.mxu0 0
        %756 = vmatpush1.bf16.xpose.msra.mxu0 0
        %757 = vmatprep.mubr.bf16.mxu0 0
        %758 = vmatmul.mubr.bf16.gmra.mrb[0].mxu0 %v720
        %v759 = vpop.f32.mrb[0].mxu0
        %v760 = vadd.f32 0.0, %v759
        %v761 = vpop.f32.mrb[0].mxu0
        %v762 = vpop.f32.mrb[0].mxu0
        %v763 = vpop.f32.mrb[0].mxu0
        %764 = vdwg.mxu0
        %v765 = vsel %vm632, %v760, -1e+30
        %vm766 = vcmask 130048
        %v767 = vsel %vm766, %v765, -inf
        %768 = vmax.xlane.f32.xlu0 %v767
        %v769 = vpop.xlane.xlu0 %768
        %v770 = vsub.f32 %v765, %v769
        %v771 = vmul.f32 %v770, 1.442695
        %v772 = vpow.pop %v771
        %v773 = vsel %vm766, %v772, 0.0
        %774 = vadd.xlane.f32.xlu0 %v773
        %v775 = vpop.xlane.xlu0 %774
        %v776 = vpack.c.bf16 %v772, %v772
        %v777 = vpack.c.bf16 %v617, %v614
        %779 = vrot.lane.b32.xlu0 %v777, 96
        %v780 = vpop.permute.xlu0 %779
        %v783 = vsel %vm766, %v776, 0
        %785 = vmatprep.subr.bf16.mxu0 0
        %786 = vmatpush1.bf16.msra.mxu0 %v780
        %787 = vmatprep.subr.bf16.mxu0 0
        %788 = vmatpush1.bf16.msra.mxu0 0
        %789 = vmatprep.subr.bf16.mxu0 0
        %790 = vmatpush1.bf16.msra.mxu0 0
        %791 = vmatprep.subr.bf16.mxu0 0
        %792 = vmatpush1.bf16.msra.mxu0 0
        %793 = vmatprep.subr.bf16.mxu0 0
        %794 = vmatpush1.bf16.msra.mxu0 0
        %795 = vmatprep.subr.bf16.mxu0 0
        %796 = vmatpush1.bf16.msra.mxu0 0
        %797 = vmatprep.subr.bf16.mxu0 0
        %798 = vmatpush1.bf16.msra.mxu0 0
        %799 = vmatprep.subr.bf16.mxu0 0
        %800 = vmatpush1.bf16.msra.mxu0 0
        %801 = vmatprep.subr.bf16.mxu0 0
        %802 = vmatpush1.bf16.msra.mxu0 0
        %803 = vmatprep.subr.bf16.mxu0 0
        %804 = vmatpush1.bf16.msra.mxu0 0
        %805 = vmatprep.subr.bf16.mxu0 0
        %806 = vmatpush1.bf16.msra.mxu0 0
        %807 = vmatprep.subr.bf16.mxu0 0
        %808 = vmatpush1.bf16.msra.mxu0 0
        %809 = vmatprep.subr.bf16.mxu0 0
        %810 = vmatpush1.bf16.msra.mxu0 0
        %811 = vmatprep.subr.bf16.mxu0 0
        %812 = vmatpush1.bf16.msra.mxu0 0
        %813 = vmatprep.subr.bf16.mxu0 0
        %814 = vmatpush1.bf16.msra.mxu0 0
        %815 = vmatprep.subr.bf16.mxu0 0
        %816 = vmatpush1.bf16.msra.mxu0 0
        %817 = vmatprep.mubr.bf16.mxu0 0
        %818 = vmatmul.mubr.bf16.gmra.mrb[0].mxu0 %v783
        %v819 = vpop.f32.mrb[0].mxu0
        %v820 = vadd.f32 0.0, %v819
        %v821 = vpop.f32.mrb[0].mxu0
        %v822 = vpop.f32.mrb[0].mxu0
        %v823 = vpop.f32.mrb[0].mxu0
        %824 = vdwg.mxu0
        %v825 = vrcp.pop %v775
        %v826 = vmul.f32 %v820, %v825
        %827 = vrot.lane.b32.xlu0 %v620, 8
        %v828 = vpop.permute.xlu0 %827
        %v830 = vmul.f32 %v633, %v828
        %831 = vrot.lane.b32.xlu0 %v621, 12
        %v832 = vpop.permute.xlu0 %831
        %v834 = vmul.f32 %v633, %v832
        %836 = vrot.lane.b32.xlu0 %v834, 124
        %v837 = vpop.permute.xlu0 %836
        %v839 = vsub.f32 %v830, %v837
        %840 = vrot.lane.b32.xlu0 %v621, 8
        %v841 = vpop.permute.xlu0 %840
        %v843 = vmul.f32 %v633, %v841
        %844 = vrot.lane.b32.xlu0 %v620, 12
        %v845 = vpop.permute.xlu0 %844
        %v847 = vmul.f32 %v633, %v845
        %849 = vrot.lane.b32.xlu0 %v847, 124
        %v850 = vpop.permute.xlu0 %849
        %v852 = vadd.f32 %v843, %v850
        %854 = vrot.lane.b32.xlu0 %v839, 120
        %v855 = vpop.permute.xlu0 %854
        %858 = vrot.lane.b32.xlu0 %v852, 124
        %v859 = vpop.permute.xlu0 %858
        %v861 = vsel %vm660, %v855, %v859
        %862 = vrot.lane.b32.xlu0 %v622, 8
        %v863 = vpop.permute.xlu0 %862
        %864 = vrot.lane.b32.xlu0 %v623, 8
        %v865 = vpop.permute.xlu0 %864
        %v868 = vmul.f32 %v614, %v863
        %v869 = vmul.f32 %v617, %v865
        %870 = vrot.lane.b32.xlu0 %v624, 12
        %v871 = vpop.permute.xlu0 %870
        %872 = vrot.lane.b32.xlu0 %v625, 12
        %v873 = vpop.permute.xlu0 %872
        %v876 = vmul.f32 %v614, %v871
        %v877 = vmul.f32 %v617, %v873
        %880 = vrot.lane.b32.xlu0 %v876, 124
        %v881 = vpop.permute.xlu0 %880
        %882 = vrot.lane.b32.xlu0 %v877, 124
        %v883 = vpop.permute.xlu0 %882
        %v886 = vsub.f32 %v868, %v881
        %v887 = vsub.f32 %v869, %v883
        %888 = vrot.lane.b32.xlu0 %v624, 8
        %v889 = vpop.permute.xlu0 %888
        %890 = vrot.lane.b32.xlu0 %v625, 8
        %v891 = vpop.permute.xlu0 %890
        %v894 = vmul.f32 %v614, %v889
        %v895 = vmul.f32 %v617, %v891
        %896 = vrot.lane.b32.xlu0 %v622, 12
        %v897 = vpop.permute.xlu0 %896
        %898 = vrot.lane.b32.xlu0 %v623, 12
        %v899 = vpop.permute.xlu0 %898
        %v902 = vmul.f32 %v614, %v897
        %v903 = vmul.f32 %v617, %v899
        %906 = vrot.lane.b32.xlu0 %v902, 124
        %v907 = vpop.permute.xlu0 %906
        %908 = vrot.lane.b32.xlu0 %v903, 124
        %v909 = vpop.permute.xlu0 %908
        %v912 = vadd.f32 %v894, %v907
        %v913 = vadd.f32 %v895, %v909
        %916 = vrot.lane.b32.xlu0 %v886, 120
        %v917 = vpop.permute.xlu0 %916
        %918 = vrot.lane.b32.xlu0 %v887, 120
        %v919 = vpop.permute.xlu0 %918
        %924 = vrot.lane.b32.xlu0 %v912, 124
        %v925 = vpop.permute.xlu0 %924
        %926 = vrot.lane.b32.xlu0 %v913, 124
        %v927 = vpop.permute.xlu0 %926
        %v930 = vsel %vm660, %v917, %v925
        %v931 = vsel %vm660, %v919, %v927
        %v932 = vpack.c.bf16 %v861, %v861
        %v933 = vpack.c.bf16 %v931, %v930
        %v935 = vsel %vm718, %v932, 0
        %v938 = vsel %vm718, %v933, 0
        %940 = vmatprep.subr.bf16.mxu0 0
        %941 = vmatpush1.bf16.xpose.msra.mxu0 %v938
        %942 = vmatprep.subr.bf16.mxu0 0
        %943 = vmatpush1.bf16.xpose.msra.mxu0 0
        %944 = vmatprep.subr.bf16.mxu0 0
        %945 = vmatpush1.bf16.xpose.msra.mxu0 0
        %946 = vmatprep.subr.bf16.mxu0 0
        %947 = vmatpush1.bf16.xpose.msra.mxu0 0
        %948 = vmatprep.subr.bf16.mxu0 0
        %949 = vmatpush1.bf16.xpose.msra.mxu0 0
        %950 = vmatprep.subr.bf16.mxu0 0
        %951 = vmatpush1.bf16.xpose.msra.mxu0 0
        %952 = vmatprep.subr.bf16.mxu0 0
        %953 = vmatpush1.bf16.xpose.msra.mxu0 0
        %954 = vmatprep.subr.bf16.mxu0 0
        %955 = vmatpush1.bf16.xpose.msra.mxu0 0
        %956 = vmatprep.subr.bf16.mxu0 0
        %957 = vmatpush1.bf16.xpose.msra.mxu0 0
        %958 = vmatprep.subr.bf16.mxu0 0
        %959 = vmatpush1.bf16.xpose.msra.mxu0 0
        %960 = vmatprep.subr.bf16.mxu0 0
        %961 = vmatpush1.bf16.xpose.msra.mxu0 0
        %962 = vmatprep.subr.bf16.mxu0 0
        %963 = vmatpush1.bf16.xpose.msra.mxu0 0
        %964 = vmatprep.subr.bf16.mxu0 0
        %965 = vmatpush1.bf16.xpose.msra.mxu0 0
        %966 = vmatprep.subr.bf16.mxu0 0
        %967 = vmatpush1.bf16.xpose.msra.mxu0 0
        %968 = vmatprep.subr.bf16.mxu0 0
        %969 = vmatpush1.bf16.xpose.msra.mxu0 0
        %970 = vmatprep.subr.bf16.mxu0 0
        %971 = vmatpush1.bf16.xpose.msra.mxu0 0
        %972 = vmatprep.mubr.bf16.mxu0 0
        %973 = vmatmul.mubr.bf16.gmra.mrb[0].mxu0 %v935
        %v974 = vpop.f32.mrb[0].mxu0
        %v975 = vadd.f32 0.0, %v974
        %v976 = vpop.f32.mrb[0].mxu0
        %v977 = vpop.f32.mrb[0].mxu0
        %v978 = vpop.f32.mrb[0].mxu0
        %979 = vdwg.mxu0
        %v980 = vsel %vm632, %v975, -1e+30
        %v981 = vsel %vm766, %v980, -inf
        %982 = vmax.xlane.f32.xlu0 %v981
        %v983 = vpop.xlane.xlu0 %982
        %v984 = vsub.f32 %v980, %v983
        %v985 = vmul.f32 %v984, 1.442695
        %v986 = vpow.pop %v985
        %v987 = vsel %vm766, %v986, 0.0
        %988 = vadd.xlane.f32.xlu0 %v987
        %v989 = vpop.xlane.xlu0 %988
        %v990 = vpack.c.bf16 %v986, %v986
        %991 = vrot.lane.b32.xlu0 %v777, 88
        %v992 = vpop.permute.xlu0 %991
        %v995 = vsel %vm766, %v990, 0
        %997 = vmatprep.subr.bf16.mxu0 0
        %998 = vmatpush1.bf16.msra.mxu0 %v992
        %999 = vmatprep.subr.bf16.mxu0 0
        %1000 = vmatpush1.bf16.msra.mxu0 0
        %1001 = vmatprep.subr.bf16.mxu0 0
        %1002 = vmatpush1.bf16.msra.mxu0 0
        %1003 = vmatprep.subr.bf16.mxu0 0
        %1004 = vmatpush1.bf16.msra.mxu0 0
        %1005 = vmatprep.subr.bf16.mxu0 0
        %1006 = vmatpush1.bf16.msra.mxu0 0
        %1007 = vmatprep.subr.bf16.mxu0 0
        %1008 = vmatpush1.bf16.msra.mxu0 0
        %1009 = vmatprep.subr.bf16.mxu0 0
        %1010 = vmatpush1.bf16.msra.mxu0 0
        %1011 = vmatprep.subr.bf16.mxu0 0
        %1012 = vmatpush1.bf16.msra.mxu0 0
        %1013 = vmatprep.subr.bf16.mxu0 0
        %1014 = vmatpush1.bf16.msra.mxu0 0
        %1015 = vmatprep.subr.bf16.mxu0 0
        %1016 = vmatpush1.bf16.msra.mxu0 0
        %1017 = vmatprep.subr.bf16.mxu0 0
        %1018 = vmatpush1.bf16.msra.mxu0 0
        %1019 = vmatprep.subr.bf16.mxu0 0
        %1020 = vmatpush1.bf16.msra.mxu0 0
        %1021 = vmatprep.subr.bf16.mxu0 0
        %1022 = vmatpush1.bf16.msra.mxu0 0
        %1023 = vmatprep.subr.bf16.mxu0 0
        %1024 = vmatpush1.bf16.msra.mxu0 0
        %1025 = vmatprep.subr.bf16.mxu0 0
        %1026 = vmatpush1.bf16.msra.mxu0 0
        %1027 = vmatprep.subr.bf16.mxu0 0
        %1028 = vmatpush1.bf16.msra.mxu0 0
        %1029 = vmatprep.mubr.bf16.mxu0 0
        %1030 = vmatmul.mubr.bf16.gmra.mrb[0].mxu0 %v995
        %v1031 = vpop.f32.mrb[0].mxu0
        %v1032 = vadd.f32 0.0, %v1031
        %v1033 = vpop.f32.mrb[0].mxu0
        %v1034 = vpop.f32.mrb[0].mxu0
        %v1035 = vpop.f32.mrb[0].mxu0
        %1036 = vdwg.mxu0
        %v1037 = vrcp.pop %v989
        %v1038 = vmul.f32 %v1032, %v1037
        %1039 = vrot.lane.b32.xlu0 %v620, 16
        %v1040 = vpop.permute.xlu0 %1039
        %v1042 = vmul.f32 %v633, %v1040
        %1043 = vrot.lane.b32.xlu0 %v621, 20
        %v1044 = vpop.permute.xlu0 %1043
        %v1046 = vmul.f32 %v633, %v1044
        %1048 = vrot.lane.b32.xlu0 %v1046, 124
        %v1049 = vpop.permute.xlu0 %1048
        %v1051 = vsub.f32 %v1042, %v1049
        %1052 = vrot.lane.b32.xlu0 %v621, 16
        %v1053 = vpop.permute.xlu0 %1052
        %v1055 = vmul.f32 %v633, %v1053
        %1056 = vrot.lane.b32.xlu0 %v620, 20
        %v1057 = vpop.permute.xlu0 %1056
        %v1059 = vmul.f32 %v633, %v1057
        %1061 = vrot.lane.b32.xlu0 %v1059, 124
        %v1062 = vpop.permute.xlu0 %1061
        %v1064 = vadd.f32 %v1055, %v1062
        %1066 = vrot.lane.b32.xlu0 %v1051, 112
        %v1067 = vpop.permute.xlu0 %1066
        %1070 = vrot.lane.b32.xlu0 %v1064, 116
        %v1071 = vpop.permute.xlu0 %1070
        %v1073 = vsel %vm660, %v1067, %v1071
        %1074 = vrot.lane.b32.xlu0 %v622, 16
        %v1075 = vpop.permute.xlu0 %1074
        %1076 = vrot.lane.b32.xlu0 %v623, 16
        %v1077 = vpop.permute.xlu0 %1076
        %v1080 = vmul.f32 %v614, %v1075
        %v1081 = vmul.f32 %v617, %v1077
        %1082 = vrot.lane.b32.xlu0 %v624, 20
        %v1083 = vpop.permute.xlu0 %1082
        %1084 = vrot.lane.b32.xlu0 %v625, 20
        %v1085 = vpop.permute.xlu0 %1084
        %v1088 = vmul.f32 %v614, %v1083
        %v1089 = vmul.f32 %v617, %v1085
        %1092 = vrot.lane.b32.xlu0 %v1088, 124
        %v1093 = vpop.permute.xlu0 %1092
        %1094 = vrot.lane.b32.xlu0 %v1089, 124
        %v1095 = vpop.permute.xlu0 %1094
        %v1098 = vsub.f32 %v1080, %v1093
        %v1099 = vsub.f32 %v1081, %v1095
        %1100 = vrot.lane.b32.xlu0 %v624, 16
        %v1101 = vpop.permute.xlu0 %1100
        %1102 = vrot.lane.b32.xlu0 %v625, 16
        %v1103 = vpop.permute.xlu0 %1102
        %v1106 = vmul.f32 %v614, %v1101
        %v1107 = vmul.f32 %v617, %v1103
        %1108 = vrot.lane.b32.xlu0 %v622, 20
        %v1109 = vpop.permute.xlu0 %1108
        %1110 = vrot.lane.b32.xlu0 %v623, 20
        %v1111 = vpop.permute.xlu0 %1110
        %v1114 = vmul.f32 %v614, %v1109
        %v1115 = vmul.f32 %v617, %v1111
        %1118 = vrot.lane.b32.xlu0 %v1114, 124
        %v1119 = vpop.permute.xlu0 %1118
        %1120 = vrot.lane.b32.xlu0 %v1115, 124
        %v1121 = vpop.permute.xlu0 %1120
        %v1124 = vadd.f32 %v1106, %v1119
        %v1125 = vadd.f32 %v1107, %v1121
        %1128 = vrot.lane.b32.xlu0 %v1098, 112
        %v1129 = vpop.permute.xlu0 %1128
        %1130 = vrot.lane.b32.xlu0 %v1099, 112
        %v1131 = vpop.permute.xlu0 %1130
        %1136 = vrot.lane.b32.xlu0 %v1124, 116
        %v1137 = vpop.permute.xlu0 %1136
        %1138 = vrot.lane.b32.xlu0 %v1125, 116
        %v1139 = vpop.permute.xlu0 %1138
        %v1142 = vsel %vm660, %v1129, %v1137
        %v1143 = vsel %vm660, %v1131, %v1139
        %v1144 = vpack.c.bf16 %v1073, %v1073
        %v1145 = vpack.c.bf16 %v1143, %v1142
        %v1147 = vsel %vm718, %v1144, 0
        %v1150 = vsel %vm718, %v1145, 0
        %1152 = vmatprep.subr.bf16.mxu0 0
        %1153 = vmatpush1.bf16.xpose.msra.mxu0 %v1150
        %1154 = vmatprep.subr.bf16.mxu0 0
        %1155 = vmatpush1.bf16.xpose.msra.mxu0 0
        %1156 = vmatprep.subr.bf16.mxu0 0
        %1157 = vmatpush1.bf16.xpose.msra.mxu0 0
        %1158 = vmatprep.subr.bf16.mxu0 0
        %1159 = vmatpush1.bf16.xpose.msra.mxu0 0
        %1160 = vmatprep.subr.bf16.mxu0 0
        %1161 = vmatpush1.bf16.xpose.msra.mxu0 0
        %1162 = vmatprep.subr.bf16.mxu0 0
        %1163 = vmatpush1.bf16.xpose.msra.mxu0 0
        %1164 = vmatprep.subr.bf16.mxu0 0
        %1165 = vmatpush1.bf16.xpose.msra.mxu0 0
        %1166 = vmatprep.subr.bf16.mxu0 0
        %1167 = vmatpush1.bf16.xpose.msra.mxu0 0
        %1168 = vmatprep.subr.bf16.mxu0 0
        %1169 = vmatpush1.bf16.xpose.msra.mxu0 0
        %1170 = vmatprep.subr.bf16.mxu0 0
        %1171 = vmatpush1.bf16.xpose.msra.mxu0 0
        %1172 = vmatprep.subr.bf16.mxu0 0
        %1173 = vmatpush1.bf16.xpose.msra.mxu0 0
        %1174 = vmatprep.subr.bf16.mxu0 0
        %1175 = vmatpush1.bf16.xpose.msra.mxu0 0
        %1176 = vmatprep.subr.bf16.mxu0 0
        %1177 = vmatpush1.bf16.xpose.msra.mxu0 0
        %1178 = vmatprep.subr.bf16.mxu0 0
        %1179 = vmatpush1.bf16.xpose.msra.mxu0 0
        %1180 = vmatprep.subr.bf16.mxu0 0
        %1181 = vmatpush1.bf16.xpose.msra.mxu0 0
        %1182 = vmatprep.subr.bf16.mxu0 0
        %1183 = vmatpush1.bf16.xpose.msra.mxu0 0
        %1184 = vmatprep.mubr.bf16.mxu0 0
        %1185 = vmatmul.mubr.bf16.gmra.mrb[0].mxu0 %v1147
        %v1186 = vpop.f32.mrb[0].mxu0
        %v1187 = vadd.f32 0.0, %v1186
        %v1188 = vpop.f32.mrb[0].mxu0
        %v1189 = vpop.f32.mrb[0].mxu0
        %v1190 = vpop.f32.mrb[0].mxu0
        %1191 = vdwg.mxu0
        %v1192 = vsel %vm632, %v1187, -1e+30
        %v1193 = vsel %vm766, %v1192, -inf
        %1194 = vmax.xlane.f32.xlu0 %v1193
        %v1195 = vpop.xlane.xlu0 %1194
        %v1196 = vsub.f32 %v1192, %v1195
        %v1197 = vmul.f32 %v1196, 1.442695
        %v1198 = vpow.pop %v1197
        %v1199 = vsel %vm766, %v1198, 0.0
        %1200 = vadd.xlane.f32.xlu0 %v1199
        %v1201 = vpop.xlane.xlu0 %1200
        %v1202 = vpack.c.bf16 %v1198, %v1198
        %1203 = vrot.lane.b32.xlu0 %v777, 80
        %v1204 = vpop.permute.xlu0 %1203
        %v1207 = vsel %vm766, %v1202, 0
        %1209 = vmatprep.subr.bf16.mxu0 0
        %1210 = vmatpush1.bf16.msra.mxu0 %v1204
        %1211 = vmatprep.subr.bf16.mxu0 0
        %1212 = vmatpush1.bf16.msra.mxu0 0
        %1213 = vmatprep.subr.bf16.mxu0 0
        %1214 = vmatpush1.bf16.msra.mxu0 0
        %1215 = vmatprep.subr.bf16.mxu0 0
        %1216 = vmatpush1.bf16.msra.mxu0 0
        %1217 = vmatprep.subr.bf16.mxu0 0
        %1218 = vmatpush1.bf16.msra.mxu0 0
        %1219 = vmatprep.subr.bf16.mxu0 0
        %1220 = vmatpush1.bf16.msra.mxu0 0
        %1221 = vmatprep.subr.bf16.mxu0 0
        %1222 = vmatpush1.bf16.msra.mxu0 0
        %1223 = vmatprep.subr.bf16.mxu0 0
        %1224 = vmatpush1.bf16.msra.mxu0 0
        %1225 = vmatprep.subr.bf16.mxu0 0
        %1226 = vmatpush1.bf16.msra.mxu0 0
        %1227 = vmatprep.subr.bf16.mxu0 0
        %1228 = vmatpush1.bf16.msra.mxu0 0
        %1229 = vmatprep.subr.bf16.mxu0 0
        %1230 = vmatpush1.bf16.msra.mxu0 0
        %1231 = vmatprep.subr.bf16.mxu0 0
        %1232 = vmatpush1.bf16.msra.mxu0 0
        %1233 = vmatprep.subr.bf16.mxu0 0
        %1234 = vmatpush1.bf16.msra.mxu0 0
        %1235 = vmatprep.subr.bf16.mxu0 0
        %1236 = vmatpush1.bf16.msra.mxu0 0
        %1237 = vmatprep.subr.bf16.mxu0 0
        %1238 = vmatpush1.bf16.msra.mxu0 0
        %1239 = vmatprep.subr.bf16.mxu0 0
        %1240 = vmatpush1.bf16.msra.mxu0 0
        %1241 = vmatprep.mubr.bf16.mxu0 0
        %1242 = vmatmul.mubr.bf16.gmra.mrb[0].mxu0 %v1207
        %v1243 = vpop.f32.mrb[0].mxu0
        %v1244 = vadd.f32 0.0, %v1243
        %v1245 = vpop.f32.mrb[0].mxu0
        %v1246 = vpop.f32.mrb[0].mxu0
        %v1247 = vpop.f32.mrb[0].mxu0
        %1248 = vdwg.mxu0
        %v1249 = vrcp.pop %v1201
        %v1250 = vmul.f32 %v1244, %v1249
        %1251 = vrot.lane.b32.xlu0 %v620, 24
        %v1252 = vpop.permute.xlu0 %1251
        %v1254 = vmul.f32 %v633, %v1252
        %1255 = vrot.lane.b32.xlu0 %v621, 28
        %v1256 = vpop.permute.xlu0 %1255
        %v1258 = vmul.f32 %v633, %v1256
        %1260 = vrot.lane.b32.xlu0 %v1258, 124
        %v1261 = vpop.permute.xlu0 %1260
        %v1263 = vsub.f32 %v1254, %v1261
        %1264 = vrot.lane.b32.xlu0 %v621, 24
        %v1265 = vpop.permute.xlu0 %1264
        %v1267 = vmul.f32 %v633, %v1265
        %1268 = vrot.lane.b32.xlu0 %v620, 28
        %v1269 = vpop.permute.xlu0 %1268
        %v1271 = vmul.f32 %v633, %v1269
        %1273 = vrot.lane.b32.xlu0 %v1271, 124
        %v1274 = vpop.permute.xlu0 %1273
        %v1276 = vadd.f32 %v1267, %v1274
        %1278 = vrot.lane.b32.xlu0 %v1263, 104
        %v1279 = vpop.permute.xlu0 %1278
        %1282 = vrot.lane.b32.xlu0 %v1276, 108
        %v1283 = vpop.permute.xlu0 %1282
        %v1285 = vsel %vm660, %v1279, %v1283
        %1286 = vrot.lane.b32.xlu0 %v622, 24
        %v1287 = vpop.permute.xlu0 %1286
        %1288 = vrot.lane.b32.xlu0 %v623, 24
        %v1289 = vpop.permute.xlu0 %1288
        %v1292 = vmul.f32 %v614, %v1287
        %v1293 = vmul.f32 %v617, %v1289
        %1294 = vrot.lane.b32.xlu0 %v624, 28
        %v1295 = vpop.permute.xlu0 %1294
        %1296 = vrot.lane.b32.xlu0 %v625, 28
        %v1297 = vpop.permute.xlu0 %1296
        %v1300 = vmul.f32 %v614, %v1295
        %v1301 = vmul.f32 %v617, %v1297
        %1304 = vrot.lane.b32.xlu0 %v1300, 124
        %v1305 = vpop.permute.xlu0 %1304
        %1306 = vrot.lane.b32.xlu0 %v1301, 124
        %v1307 = vpop.permute.xlu0 %1306
        %v1310 = vsub.f32 %v1292, %v1305
        %v1311 = vsub.f32 %v1293, %v1307
        %1312 = vrot.lane.b32.xlu0 %v624, 24
        %v1313 = vpop.permute.xlu0 %1312
        %1314 = vrot.lane.b32.xlu0 %v625, 24
        %v1315 = vpop.permute.xlu0 %1314
        %v1318 = vmul.f32 %v614, %v1313
        %v1319 = vmul.f32 %v617, %v1315
        %1320 = vrot.lane.b32.xlu0 %v622, 28
        %v1321 = vpop.permute.xlu0 %1320
        %1322 = vrot.lane.b32.xlu0 %v623, 28
        %v1323 = vpop.permute.xlu0 %1322
        %v1326 = vmul.f32 %v614, %v1321
        %v1327 = vmul.f32 %v617, %v1323
        %1330 = vrot.lane.b32.xlu0 %v1326, 124
        %v1331 = vpop.permute.xlu0 %1330
        %1332 = vrot.lane.b32.xlu0 %v1327, 124
        %v1333 = vpop.permute.xlu0 %1332
        %v1336 = vadd.f32 %v1318, %v1331
        %v1337 = vadd.f32 %v1319, %v1333
        %1340 = vrot.lane.b32.xlu0 %v1310, 104
        %v1341 = vpop.permute.xlu0 %1340
        %1342 = vrot.lane.b32.xlu0 %v1311, 104
        %v1343 = vpop.permute.xlu0 %1342
        %1348 = vrot.lane.b32.xlu0 %v1336, 108
        %v1349 = vpop.permute.xlu0 %1348
        %1350 = vrot.lane.b32.xlu0 %v1337, 108
        %v1351 = vpop.permute.xlu0 %1350
        %v1354 = vsel %vm660, %v1341, %v1349
        %v1355 = vsel %vm660, %v1343, %v1351
        %v1356 = vpack.c.bf16 %v1285, %v1285
        %v1357 = vpack.c.bf16 %v1355, %v1354
        %v1359 = vsel %vm718, %v1356, 0
        %v1362 = vsel %vm718, %v1357, 0
        %1364 = vmatprep.subr.bf16.mxu0 0
        %1365 = vmatpush1.bf16.xpose.msra.mxu0 %v1362
        %1366 = vmatprep.subr.bf16.mxu0 0
        %1367 = vmatpush1.bf16.xpose.msra.mxu0 0
        %1368 = vmatprep.subr.bf16.mxu0 0
        %1369 = vmatpush1.bf16.xpose.msra.mxu0 0
        %1370 = vmatprep.subr.bf16.mxu0 0
        %1371 = vmatpush1.bf16.xpose.msra.mxu0 0
        %1372 = vmatprep.subr.bf16.mxu0 0
        %1373 = vmatpush1.bf16.xpose.msra.mxu0 0
        %1374 = vmatprep.subr.bf16.mxu0 0
        %1375 = vmatpush1.bf16.xpose.msra.mxu0 0
        %1376 = vmatprep.subr.bf16.mxu0 0
        %1377 = vmatpush1.bf16.xpose.msra.mxu0 0
        %1378 = vmatprep.subr.bf16.mxu0 0
        %1379 = vmatpush1.bf16.xpose.msra.mxu0 0
        %1380 = vmatprep.subr.bf16.mxu0 0
        %1381 = vmatpush1.bf16.xpose.msra.mxu0 0
        %1382 = vmatprep.subr.bf16.mxu0 0
        %1383 = vmatpush1.bf16.xpose.msra.mxu0 0
        %1384 = vmatprep.subr.bf16.mxu0 0
        %1385 = vmatpush1.bf16.xpose.msra.mxu0 0
        %1386 = vmatprep.subr.bf16.mxu0 0
        %1387 = vmatpush1.bf16.xpose.msra.mxu0 0
        %1388 = vmatprep.subr.bf16.mxu0 0
        %1389 = vmatpush1.bf16.xpose.msra.mxu0 0
        %1390 = vmatprep.subr.bf16.mxu0 0
        %1391 = vmatpush1.bf16.xpose.msra.mxu0 0
        %1392 = vmatprep.subr.bf16.mxu0 0
        %1393 = vmatpush1.bf16.xpose.msra.mxu0 0
        %1394 = vmatprep.subr.bf16.mxu0 0
        %1395 = vmatpush1.bf16.xpose.msra.mxu0 0
        %1396 = vmatprep.mubr.bf16.mxu0 0
        %1397 = vmatmul.mubr.bf16.gmra.mrb[0].mxu0 %v1359
        %v1398 = vpop.f32.mrb[0].mxu0
        %v1399 = vadd.f32 0.0, %v1398
        %v1400 = vpop.f32.mrb[0].mxu0
        %v1401 = vpop.f32.mrb[0].mxu0
        %v1402 = vpop.f32.mrb[0].mxu0
        %1403 = vdwg.mxu0
        %v1404 = vsel %vm632, %v1399, -1e+30
        %v1405 = vsel %vm766, %v1404, -inf
        %1406 = vmax.xlane.f32.xlu0 %v1405
        %v1407 = vpop.xlane.xlu0 %1406
        %v1408 = vsub.f32 %v1404, %v1407
        %v1409 = vmul.f32 %v1408, 1.442695
        %v1410 = vpow.pop %v1409
        %v1411 = vsel %vm766, %v1410, 0.0
        %1412 = vadd.xlane.f32.xlu0 %v1411
        %v1413 = vpop.xlane.xlu0 %1412
        %v1414 = vpack.c.bf16 %v1410, %v1410
        %1415 = vrot.lane.b32.xlu0 %v777, 72
        %v1416 = vpop.permute.xlu0 %1415
        %v1419 = vsel %vm766, %v1414, 0
        %1421 = vmatprep.subr.bf16.mxu0 0
        %1422 = vmatpush1.bf16.msra.mxu0 %v1416
        %1423 = vmatprep.subr.bf16.mxu0 0
        %1424 = vmatpush1.bf16.msra.mxu0 0
        %1425 = vmatprep.subr.bf16.mxu0 0
        %1426 = vmatpush1.bf16.msra.mxu0 0
        %1427 = vmatprep.subr.bf16.mxu0 0
        %1428 = vmatpush1.bf16.msra.mxu0 0
        %1429 = vmatprep.subr.bf16.mxu0 0
        %1430 = vmatpush1.bf16.msra.mxu0 0
        %1431 = vmatprep.subr.bf16.mxu0 0
        %1432 = vmatpush1.bf16.msra.mxu0 0
        %1433 = vmatprep.subr.bf16.mxu0 0
        %1434 = vmatpush1.bf16.msra.mxu0 0
        %1435 = vmatprep.subr.bf16.mxu0 0
        %1436 = vmatpush1.bf16.msra.mxu0 0
        %1437 = vmatprep.subr.bf16.mxu0 0
        %1438 = vmatpush1.bf16.msra.mxu0 0
        %1439 = vmatprep.subr.bf16.mxu0 0
        %1440 = vmatpush1.bf16.msra.mxu0 0
        %1441 = vmatprep.subr.bf16.mxu0 0
        %1442 = vmatpush1.bf16.msra.mxu0 0
        %1443 = vmatprep.subr.bf16.mxu0 0
        %1444 = vmatpush1.bf16.msra.mxu0 0
        %1445 = vmatprep.subr.bf16.mxu0 0
        %1446 = vmatpush1.bf16.msra.mxu0 0
        %1447 = vmatprep.subr.bf16.mxu0 0
        %1448 = vmatpush1.bf16.msra.mxu0 0
        %1449 = vmatprep.subr.bf16.mxu0 0
        %1450 = vmatpush1.bf16.msra.mxu0 0
        %1451 = vmatprep.subr.bf16.mxu0 0
        %1452 = vmatpush1.bf16.msra.mxu0 0
        %1453 = vmatprep.mubr.bf16.mxu0 0
        %1454 = vmatmul.mubr.bf16.gmra.mrb[0].mxu0 %v1419
        %v1455 = vpop.f32.mrb[0].mxu0
        %v1456 = vadd.f32 0.0, %v1455
        %v1457 = vpop.f32.mrb[0].mxu0
        %v1458 = vpop.f32.mrb[0].mxu0
        %v1459 = vpop.f32.mrb[0].mxu0
        %1460 = vdwg.mxu0
        %v1461 = vrcp.pop %v1413
        %v1462 = vmul.f32 %v1456, %v1461
        %1464 = vrot.lane.b32.xlu0 %v1038, 8
        %v1465 = vpop.permute.xlu0 %1464
        %1468 = vrot.lane.b32.xlu0 %v1250, 16
        %v1469 = vpop.permute.xlu0 %1468
        %1472 = vrot.lane.b32.xlu0 %v1462, 24
        %v1473 = vpop.permute.xlu0 %1472
        %v1475 = vsel %vm718, %v826, %v1465
        %v1476 = vsel %vm766, %v1475, %v1469
        %vm1477 = vcmask 195584
        %v1478 = vsel %vm1477, %v1476, %v1473
        %v1479 = vpack.c.bf16 %v1478, %v1478
        %v1480 = vld [vmem:[%s6] sm:$0xf]
        %v1481 = vld [vmem:[%s6 + $0x4] sm:$0xf]
        %v1482 = vld [vmem:[%s6 + $0x8] sm:$0xf]
        %v1483 = vld [vmem:[%s6 + $0xc] sm:$0xf]
        %v1488 = vunpack.c.l.b16 %v1480
        %v1489 = vunpack.c.l.b16 %v1481
        %v1490 = vunpack.c.l.b16 %v1482
        %v1491 = vunpack.c.l.b16 %v1483
        %v1492 = vpack.c.b16 %v1489, %v1488
        %v1493 = vpack.c.b16 %v1491, %v1490
        %v1497 = vsel %vm509, %v1479, 0
        %1499 = vmatprep.subr.bf16.mxu0 0
        %1500 = vmatpush1.bf16.msra.mxu0 %v1492
        %1501 = vmatprep.subr.bf16.mxu0 0
        %1502 = vmatpush1.bf16.msra.mxu0 %v1493
        %1503 = vmatprep.subr.bf16.mxu0 0
        %1504 = vmatpush1.bf16.msra.mxu0 0
        %1505 = vmatprep.subr.bf16.mxu0 0
        %1506 = vmatpush1.bf16.msra.mxu0 0
        %1507 = vmatprep.subr.bf16.mxu0 0
        %1508 = vmatpush1.bf16.msra.mxu0 0
        %1509 = vmatprep.subr.bf16.mxu0 0
        %1510 = vmatpush1.bf16.msra.mxu0 0
        %1511 = vmatprep.subr.bf16.mxu0 0
        %1512 = vmatpush1.bf16.msra.mxu0 0
        %1513 = vmatprep.subr.bf16.mxu0 0
        %1514 = vmatpush1.bf16.msra.mxu0 0
        %1515 = vmatprep.subr.bf16.mxu0 0
        %1516 = vmatpush1.bf16.msra.mxu0 0
        %1517 = vmatprep.subr.bf16.mxu0 0
        %1518 = vmatpush1.bf16.msra.mxu0 0
        %1519 = vmatprep.subr.bf16.mxu0 0
        %1520 = vmatpush1.bf16.msra.mxu0 0
        %1521 = vmatprep.subr.bf16.mxu0 0
        %1522 = vmatpush1.bf16.msra.mxu0 0
        %1523 = vmatprep.subr.bf16.mxu0 0
        %1524 = vmatpush1.bf16.msra.mxu0 0
        %1525 = vmatprep.subr.bf16.mxu0 0
        %1526 = vmatpush1.bf16.msra.mxu0 0
        %1527 = vmatprep.subr.bf16.mxu0 0
        %1528 = vmatpush1.bf16.msra.mxu0 0
        %1529 = vmatprep.subr.bf16.mxu0 0
        %1530 = vmatpush1.bf16.msra.mxu0 0
        %1531 = vmatprep.mubr.bf16.mxu0 0
        %1532 = vmatmul.mubr.bf16.gmra.mrb[0].mxu0 %v1497
        %v1533 = vpop.f32.mrb[0].mxu0
        %v1534 = vadd.f32 0.0, %v1533
        %v1535 = vpop.f32.mrb[0].mxu0
        %v1536 = vpop.f32.mrb[0].mxu0
        %v1537 = vpop.f32.mrb[0].mxu0
        %1538 = vdwg.mxu0
        %1539 = vst.msk [vmem:[%s457] sm:$0xff] %vm509, %v1534
        %s1540 = sand.u32 %s301, 1
        %s1541 = scalar_lea.sflag [#allocation4], %s1540
        %s1542 = sand.u32 %s301, 1
        %s1543 = smul.addr %s1542, 8
        %s1544 = scalar_lea.vmem [#allocation5], %s1543
        // Predicated region
        $region69: #{tpu_custom_call.1} parent=63 // pred_check
          %p1545 = pneg %p311
        $region70: #{tpu_custom_call.1} parent=63 // pred_check_branch
          %1547 = sbr.rel (%p1545) target = $region72
        $region71: #{tpu_custom_call.1} parent=63 // pred_region
          %s1549 = ssub.s32 128, 128
          %1550 = vsyncadd %s1541, %s1549
          %s1551 = smul.addr %s30, 2
          %s1552 = sadd.s32 %s31, %s1551
          %s1553 = smul.addr %s1552, 128
          %s1554 = scalar_lea.hbm %s11, %s1553
          %s1556 = sshll.u32 %s1544, 4
          %s1557 = int_to_ptr.vmem [resolvable:$true] %s1556
          %1559 = dma.vmem_to_hbm [thread:$0]  %s1557, 128, %s1554, %s1541
        $region72: #{tpu_custom_call.1} parent=63 // pred_fallthru
          _
      $region64: #{tpu_custom_call.1} parent=5 // pred_fallthru
        _
      %p1560 = scmp.le.s32.totalorder 2, %s21
      // Predicated region
      $region73: #{tpu_custom_call.1} parent=5 // pred_check
        %p1561 = pneg %p1560
      $region74: #{tpu_custom_call.1} parent=5 // pred_check_branch
        %1563 = sbr.rel (%p1561) target = $region76
      $region75: #{tpu_custom_call.1} parent=5 // pred_region
        %s1564 = ssub.s32 %s21, 2
        // Predicated region
        $region77: #{tpu_custom_call.1} parent=75 // pred_check
          %p1565 = pneg %p317
        $region78: #{tpu_custom_call.1} parent=75 // pred_check_branch
          %1567 = sbr.rel (%p1565) target = $region80
        $region79: #{tpu_custom_call.1} parent=75 // pred_region
          %s1568 = sand.u32 %s302, 1
          %s1569 = scalar_lea.sflag [#allocation4], %s1568
          %s1570 = sand.u32 %s302, 1
          %s1571 = smul.addr %s1570, 8
          %s1572 = scalar_lea.vmem [#allocation5], %s1571
          %1573 = dma.done %s1569, 128
        $region80: #{tpu_custom_call.1} parent=75 // pred_fallthru
          _
      $region76: #{tpu_custom_call.1} parent=5 // pred_fallthru
        _
    $region6: #{tpu_custom_call.1} parent=1 // loop_footer
      %s25 = sadd.s32 1, %s21
    $region7: #{tpu_custom_call.1} parent=1 // loop_footer_branch
      %20 = sbr.rel target = $region3
    $region8: #{tpu_custom_call.1} parent=1 // loop_exit
      _
    %1574 = vsyncpa [#allocation3], 1
    %s1575 = scalar_lea.sflag [#allocation3], 1
    %1576 = vsyncpa %s1575, 1
    %1577 = vsyncpa [#allocation4], 1
    %s1578 = scalar_lea.sflag [#allocation4], 1
    %1579 = vsyncpa %s1578, 1

</llo_original>
